<compile_context>
chip_gen: v5e
topology: v5e:2x2
jax: 0.10.0
libtpu: 0.0.40
codegen_flags: <defaults>
</compile_context>

<pallas_src>
import functools
import math

import jax
import jax.numpy as jnp
from jax.experimental import pallas as pl
from jax.experimental.pallas import tpu as pltpu


# ----------------------------------------------------------------------------
# Helpers
# ----------------------------------------------------------------------------
def _pick_tile(n, candidates):
    for c in candidates:
        if n % c == 0:
            return c
    return n


def _auto_vmem_limit():
    # ~85% of per-core VMEM: ~54 MiB on v7x (64 MiB cores), capped at 110 MiB
    # on v5e/v6e (128 MiB cores).  Falls back to the previously-working 64 MiB.
    try:
        cap = int(pltpu.get_tpu_info().vmem_capacity_bytes)
        return min(int(cap * 0.85), 110 * 1024 * 1024)
    except Exception:
        return 64 * 1024 * 1024


# ----------------------------------------------------------------------------
# Kernel 1: QKV projection
#   rmsnorm -> modulate -> Wq/Wk/Wv -> qk LayerNorm -> full-width RoPE
# ----------------------------------------------------------------------------
def _qkv_kernel(n_heads, n_kv_heads, eps,
                x_ref, ada_ref, cos_ref, sin_ref, nw_ref,
                wq_ref, wk_ref, wv_ref,
                qnw_ref, qnb_ref, knw_ref, knb_ref,
                q_ref, k_ref, v_ref):
    x = x_ref[0]                                   # (tS, D) f32
    ada = ada_ref[0]                               # (3, D): shift, scale, gate
    shift, scale = ada[0:1], ada[1:2]

    # RMSNorm + adaLN modulate.
    ms = jnp.mean(x * x, axis=-1, keepdims=True)
    h = x * jax.lax.rsqrt(ms + eps) * nw_ref[...]
    h = h * (1.0 + scale) + shift
    hb = h.astype(jnp.bfloat16)

    # QKV projections (bf16 MXU, f32 accumulation).
    q = jnp.dot(hb, wq_ref[...], preferred_element_type=jnp.float32)   # (tS, D)
    k = jnp.dot(hb, wk_ref[...], preferred_element_type=jnp.float32)   # (tS, Dkv)
    v = jnp.dot(hb, wv_ref[...], preferred_element_type=jnp.float32)   # (tS, Dkv)

    def layernorm(t, w, b):
        mu = jnp.mean(t, axis=-1, keepdims=True)
        var = jnp.mean((t - mu) * (t - mu), axis=-1, keepdims=True)
        # NOTE: torch nn.LayerNorm default eps=1e-5 (independent of norm_eps).
        return (t - mu) * jax.lax.rsqrt(var + 1e-5) * w + b

    q = layernorm(q, qnw_ref[...], qnb_ref[...])
    k = layernorm(k, knw_ref[...], knb_ref[...])

    # Full-width RoPE.  The even/odd swap stays inside each (even-width) head,
    # so rolling the full lane width by +/-1 never mixes heads; sin already
    # carries the +/- sign (-sin on even lanes, +sin on odd).
    cos = cos_ref[...]                             # (tS, hd)
    sin = sin_ref[...]                             # (tS, hd)

    def rope(t, reps):
        c = jnp.tile(cos, (1, reps))
        s = jnp.tile(sin, (1, reps))
        w = t.shape[-1]
        lane = jax.lax.broadcasted_iota(jnp.int32, t.shape, 1)
        even = (lane % 2) == 0
        swapped = jnp.where(even, pltpu.roll(t, w - 1, 1), pltpu.roll(t, 1, 1))
        return t * c + swapped * s

    q_ref[0] = rope(q, n_heads).astype(q_ref.dtype)
    k_ref[0] = rope(k, n_kv_heads).astype(k_ref.dtype)
    v_ref[0] = v.astype(v_ref.dtype)


# ----------------------------------------------------------------------------
# Kernel 2: flash attention + Wo + gated residual
# ----------------------------------------------------------------------------
def _flash_attn_kernel(n_heads, n_kv_heads, sm_scale,
                       q_ref, k_ref, v_ref, x_ref, ada_ref, wo_ref,
                       o_ref, m_scr, l_scr, acc_scr):
    ki = pl.program_id(2)
    nk = pl.num_programs(2)
    D = q_ref.shape[2]
    hd = D // n_heads
    n_rep = n_heads // n_kv_heads

    @pl.when(ki == 0)
    def _():
        m_scr[...] = jnp.full(m_scr.shape, -jnp.inf, m_scr.dtype)
        l_scr[...] = jnp.zeros(l_scr.shape, l_scr.dtype)
        acc_scr[...] = jnp.zeros(acc_scr.shape, acc_scr.dtype)

    q = q_ref[0]                                   # (tQ, D)   bf16
    k = k_ref[0]                                   # (tK, Dkv) bf16
    v = v_ref[0]                                   # (tK, Dkv) bf16

    # TODO(synk): batch the n_rep query heads of each GQA group along M to fill
    # the 256-wide MXU on v6e/v7x; per-head matmuls are kept for clarity.
    for g in range(n_kv_heads):
        kg = k[:, g * hd:(g + 1) * hd]             # (tK, hd)
        vg = v[:, g * hd:(g + 1) * hd]             # (tK, hd)
        for r in range(n_rep):
            h = g * n_rep + r
            qh = q[:, h * hd:(h + 1) * hd]         # (tQ, hd)
            # Scores via dot_general contracting last dims (no kT transpose).
            s = jax.lax.dot_general(
                qh, kg, (((1,), (1,)), ((), ())),
                preferred_element_type=jnp.float32) * sm_scale      # (tQ, tK)
            m_prev = m_scr[:, h:h + 1]
            l_prev = l_scr[:, h:h + 1]
            m_new = jnp.maximum(m_prev, jnp.max(s, axis=-1, keepdims=True))
            alpha = jnp.exp(m_prev - m_new)
            p = jnp.exp(s - m_new)
            l_scr[:, h:h + 1] = alpha * l_prev + jnp.sum(p, axis=-1, keepdims=True)
            pv = jnp.dot(p.astype(jnp.bfloat16), vg,
                         preferred_element_type=jnp.float32)        # (tQ, hd)
            acc_scr[:, h * hd:(h + 1) * hd] = (
                alpha * acc_scr[:, h * hd:(h + 1) * hd] + pv)
            m_scr[:, h:h + 1] = m_new

    @pl.when(ki == nk - 1)
    def _():
        # Exact per-head normalization in place in the (tQ, D) scratch, then
        # ONE full-width (tQ, D) @ (D, D) Wo matmul and the gated residual.
        for h in range(n_heads):
            inv = 1.0 / l_scr[:, h:h + 1]
            acc_scr[:, h * hd:(h + 1) * hd] = acc_scr[:, h * hd:(h + 1) * hd] * inv
        o_all = acc_scr[...].astype(jnp.bfloat16)
        attn = jnp.dot(o_all, wo_ref[...], preferred_element_type=jnp.float32)
        ada = ada_ref[0]
        gate = ada[2:3]                            # (1, D)
        o_ref[0] = (x_ref[0] + gate * attn).astype(o_ref.dtype)


# ----------------------------------------------------------------------------
# Kernel 3: SwiGLU FFN, hidden dimension tiled with an f32 accumulator
# ----------------------------------------------------------------------------
def _ffn_kernel(eps, x_ref, ada_ref, nw_ref, w1_ref, w3_ref, w2_ref,
                o_ref, h_scr, acc_scr):
    ht = pl.program_id(2)
    nh = pl.num_programs(2)

    @pl.when(ht == 0)
    def _():
        x = x_ref[0]                               # (tS, D) f32
        ada = ada_ref[0]
        shift, scale = ada[0:1], ada[1:2]
        ms = jnp.mean(x * x, axis=-1, keepdims=True)
        h = x * jax.lax.rsqrt(ms + eps) * nw_ref[...]
        h_scr[...] = (h * (1.0 + scale) + shift).astype(h_scr.dtype)
        acc_scr[...] = jnp.zeros(acc_scr.shape, acc_scr.dtype)

    hb = h_scr[...]                                # (tS, D) bf16
    a1 = jnp.dot(hb, w1_ref[...], preferred_element_type=jnp.float32)  # (tS, tH)
    a3 = jnp.dot(hb, w3_ref[...], preferred_element_type=jnp.float32)
    g = (a1 * jax.nn.sigmoid(a1)) * a3
    acc_scr[...] += jnp.dot(g.astype(jnp.bfloat16), w2_ref[...],
                            preferred_element_type=jnp.float32)        # (tS, D)

    @pl.when(ht == nh - 1)
    def _():
        ada = ada_ref[0]
        gate = ada[2:3]
        o_ref[0] = (x_ref[0] + gate * acc_scr[...]).astype(o_ref.dtype)


# ----------------------------------------------------------------------------
# Wrapper
# ----------------------------------------------------------------------------
def transformer_block_pallas(x, adaln, cos, sin, params, *, n_heads, n_kv_heads,
                             eps=1e-5, single_buffer_weights=True,
                             vmem_limit=None):
    B, S, D = x.shape
    hd = D // n_heads
    Dkv = n_kv_heads * hd
    H = params["w1"].shape[1]
    bf16 = jnp.bfloat16

    if vmem_limit is None:
        vmem_limit = _auto_vmem_limit()

    # ---- adaLN projection hoisted out of the kernels (tiny GEMV) ------------
    c = adaln * jax.nn.sigmoid(adaln)
    ada = jnp.dot(c, params["w_ada"],
                  precision=jax.lax.Precision.HIGHEST) + params["b_ada"]
    parts = jnp.split(ada, 6, axis=-1)             # six (B, D) pieces
    ada_msa = jnp.stack(parts[0:3], axis=1)        # (B, 3, D): shift/scale/gate
    ada_mlp = jnp.stack(parts[3:6], axis=1)

    # ---- slim RoPE tables: (S, hd), sign folded into sin ---------------------
    cos2 = jnp.repeat(cos, 2, axis=-1)
    sin2 = jnp.repeat(sin, 2, axis=-1)
    sign = jnp.where(jnp.arange(hd) % 2 == 0, -1.0, 1.0).astype(jnp.float32)
    sin2 = sin2 * sign[None, :]

    # ---- weights to bf16 (halves VMEM/DMA; MXU accumulates in f32) ----------
    wq = params["wq"].astype(bf16)
    wk = params["wk"].astype(bf16)
    wv = params["wv"].astype(bf16)
    wo = params["wo"].astype(bf16)
    w1 = params["w1"].astype(bf16)
    w3 = params["w3"].astype(bf16)
    w2 = params["w2"].astype(bf16)

    # ---- tile sizes ----------------------------------------------------------
    tS1 = _pick_tile(S, (512, 256, 128))           # QKV kernel sequence tile
    tQ = _pick_tile(S, (256, 128))                 # attention query tile
    tK = _pick_tile(S, (512, 256, 128))            # attention KV tile
    tSf = _pick_tile(S, (512, 256, 128))           # FFN sequence tile
    tH = _pick_tile(H, (2048, 1024, 512, 256, 128))  # FFN hidden tile

    def const_spec(shape, index_map):
        """Grid-invariant operand: single-buffer when supported (halves VMEM)."""
        if single_buffer_weights:
            try:
                return pl.BlockSpec(shape, index_map, pipeline_mode=pl.Buffered(1))
            except Exception:
                pass
        return pl.BlockSpec(shape, index_map)

    # ---------------- Kernel 1: QKV projection -------------------------------
    qkv_kernel = functools.partial(_qkv_kernel, n_heads, n_kv_heads, float(eps))
    q, k, v = pl.pallas_call(
        qkv_kernel,
        grid=(B, S // tS1),
        in_specs=[
            pl.BlockSpec((1, tS1, D), lambda b, t: (b, t, 0)),     # x
            pl.BlockSpec((1, 3, D), lambda b, t: (b, 0, 0)),       # ada_msa
            pl.BlockSpec((tS1, hd), lambda b, t: (t, 0)),          # cos
            pl.BlockSpec((tS1, hd), lambda b, t: (t, 0)),          # signed sin
            const_spec((1, D), lambda b, t: (0, 0)),               # attn_norm w
            const_spec((D, D), lambda b, t: (0, 0)),               # wq
            const_spec((D, Dkv), lambda b, t: (0, 0)),             # wk
            const_spec((D, Dkv), lambda b, t: (0, 0)),             # wv
            const_spec((1, D), lambda b, t: (0, 0)),               # q_norm w
            const_spec((1, D), lambda b, t: (0, 0)),               # q_norm b
            const_spec((1, Dkv), lambda b, t: (0, 0)),             # k_norm w
            const_spec((1, Dkv), lambda b, t: (0, 0)),             # k_norm b
        ],
        out_specs=[
            pl.BlockSpec((1, tS1, D), lambda b, t: (b, t, 0)),
            pl.BlockSpec((1, tS1, Dkv), lambda b, t: (b, t, 0)),
            pl.BlockSpec((1, tS1, Dkv), lambda b, t: (b, t, 0)),
        ],
        out_shape=[
            jax.ShapeDtypeStruct((B, S, D), bf16),
            jax.ShapeDtypeStruct((B, S, Dkv), bf16),
            jax.ShapeDtypeStruct((B, S, Dkv), bf16),
        ],
        compiler_params=pltpu.CompilerParams(
            dimension_semantics=("parallel", "parallel"),
            vmem_limit_bytes=vmem_limit),
    )(x, ada_msa, cos2, sin2, params["attn_norm_w"], wq, wk, wv,
      params["q_norm_w"], params["q_norm_b"],
      params["k_norm_w"], params["k_norm_b"])

    # ---------------- Kernel 2: flash attention + Wo + residual --------------
    attn_kernel = functools.partial(_flash_attn_kernel, n_heads, n_kv_heads,
                                    1.0 / math.sqrt(hd))
    x_attn = pl.pallas_call(
        attn_kernel,
        grid=(B, S // tQ, S // tK),
        in_specs=[
            pl.BlockSpec((1, tQ, D), lambda b, qi, ki: (b, qi, 0)),    # q
            pl.BlockSpec((1, tK, Dkv), lambda b, qi, ki: (b, ki, 0)),  # k
            pl.BlockSpec((1, tK, Dkv), lambda b, qi, ki: (b, ki, 0)),  # v
            pl.BlockSpec((1, tQ, D), lambda b, qi, ki: (b, qi, 0)),    # x (resid)
            pl.BlockSpec((1, 3, D), lambda b, qi, ki: (b, 0, 0)),      # ada_msa
            const_spec((D, D), lambda b, qi, ki: (0, 0)),              # wo
        ],
        out_specs=pl.BlockSpec((1, tQ, D), lambda b, qi, ki: (b, qi, 0)),
        out_shape=jax.ShapeDtypeStruct((B, S, D), x.dtype),
        scratch_shapes=[
            pltpu.VMEM((tQ, n_heads), jnp.float32),   # running max (per head)
            pltpu.VMEM((tQ, n_heads), jnp.float32),   # running sum (per head)
            pltpu.VMEM((tQ, D), jnp.float32),         # per-head acc, lane-placed
        ],
        compiler_params=pltpu.CompilerParams(
            dimension_semantics=("parallel", "parallel", "arbitrary"),
            vmem_limit_bytes=vmem_limit),
    )(q, k, v, x, ada_msa, wo)

    # ---------------- Kernel 3: SwiGLU FFN (hidden-dim tiled) ----------------
    ffn_kernel = functools.partial(_ffn_kernel, float(eps))
    out = pl.pallas_call(
        ffn_kernel,
        grid=(B, S // tSf, H // tH),
        in_specs=[
            pl.BlockSpec((1, tSf, D), lambda b, t, ht: (b, t, 0)),   # x after attn
            pl.BlockSpec((1, 3, D), lambda b, t, ht: (b, 0, 0)),     # ada_mlp
            const_spec((1, D), lambda b, t, ht: (0, 0)),             # ffn_norm w
            pl.BlockSpec((D, tH), lambda b, t, ht: (0, ht)),         # w1 tile
            pl.BlockSpec((D, tH), lambda b, t, ht: (0, ht)),         # w3 tile
            pl.BlockSpec((tH, D), lambda b, t, ht: (ht, 0)),         # w2 tile
        ],
        out_specs=pl.BlockSpec((1, tSf, D), lambda b, t, ht: (b, t, 0)),
        out_shape=jax.ShapeDtypeStruct((B, S, D), x.dtype),
        scratch_shapes=[
            pltpu.VMEM((tSf, D), jnp.bfloat16),       # modulated hidden input
            pltpu.VMEM((tSf, D), jnp.float32),        # output accumulator
        ],
        compiler_params=pltpu.CompilerParams(
            dimension_semantics=("parallel", "parallel", "arbitrary"),
            vmem_limit_bytes=vmem_limit),
    )(x_attn, ada_mlp, params["ffn_norm_w"], w1, w3, w2)

    return out


# ----------------------------------------------------------------------------
# Pure-JAX reference (mirrors the PyTorch forward, default path, f32)
# ----------------------------------------------------------------------------
def transformer_block_reference(x, adaln, cos, sin, params, *, n_heads,
                                n_kv_heads, eps=1e-5):
    B, S, D = x.shape
    hd = D // n_heads
    n_rep = n_heads // n_kv_heads

    c = adaln * jax.nn.sigmoid(adaln)
    ada = c @ params["w_ada"] + params["b_ada"]
    sm, scm, gm, smlp, sclp, gmlp = jnp.split(ada, 6, axis=1)

    def rms(v, w):
        return v * jax.lax.rsqrt(jnp.mean(v * v, -1, keepdims=True) + eps) * w

    def mod(v, sh, sc):
        return v * (1.0 + sc[:, None, :]) + sh[:, None, :]

    def ln(t, w, b):
        mu = t.mean(-1, keepdims=True)
        var = ((t - mu) ** 2).mean(-1, keepdims=True)
        return (t - mu) * jax.lax.rsqrt(var + 1e-5) * w + b

    h = mod(rms(x, params["attn_norm_w"][0]), sm, scm)
    q = h @ params["wq"]
    k = h @ params["wk"]
    v = h @ params["wv"]
    q = ln(q, params["q_norm_w"][0], params["q_norm_b"][0])
    k = ln(k, params["k_norm_w"][0], params["k_norm_b"][0])
    q = q.reshape(B, S, n_heads, hd)
    k = k.reshape(B, S, n_kv_heads, hd)
    v = v.reshape(B, S, n_kv_heads, hd)

    def rope(t, cos, sin):
        tr = t.reshape(*t.shape[:-1], hd // 2, 2)
        re, im = tr[..., 0], tr[..., 1]
        cc = cos[None, :, None, :]
        ss = sin[None, :, None, :]
        return jnp.stack([re * cc - im * ss, re * ss + im * cc],
                         axis=-1).reshape(t.shape)

    q = rope(q, cos, sin)
    k = rope(k, cos, sin)
    k = jnp.repeat(k, n_rep, axis=2)
    v = jnp.repeat(v, n_rep, axis=2)
    qh = q.transpose(0, 2, 1, 3)
    kh = k.transpose(0, 2, 1, 3)
    vh = v.transpose(0, 2, 1, 3)
    s = jnp.einsum("bhqd,bhkd->bhqk", qh, kh) / math.sqrt(hd)
    p = jax.nn.softmax(s, axis=-1)
    o = jnp.einsum("bhqk,bhkd->bhqd", p, vh).transpose(0, 2, 1, 3)
    o = o.reshape(B, S, D) @ params["wo"]
    x = x + gm[:, None, :] * o

    h2 = mod(rms(x, params["ffn_norm_w"][0]), smlp, sclp)
    a1 = h2 @ params["w1"]
    a3 = h2 @ params["w3"]
    f = (a1 * jax.nn.sigmoid(a1) * a3) @ params["w2"]
    return x + gmlp[:, None, :] * f


# ----------------------------------------------------------------------------
# Main
# ----------------------------------------------------------------------------
def _make_case(key, B, S, D, n_heads, n_kv_heads, multiple_of, w_scale):
    hd = D // n_heads
    Dkv = n_kv_heads * hd
    Dc = min(D, 1024)
    hidden = int(2 * (4 * D) / 3)
    H = multiple_of * ((hidden + multiple_of - 1) // multiple_of)
    keys = jax.random.split(key, 11)

    def rw(k, shape):
        return jax.random.normal(k, shape, jnp.float32) * w_scale

    params = {
        "w_ada": rw(keys[0], (Dc, 6 * D)),
        "b_ada": rw(keys[1], (1, 6 * D)),
        "attn_norm_w": jnp.ones((1, D), jnp.float32),
        "wq": rw(keys[2], (D, D)),
        "wk": rw(keys[3], (D, Dkv)),
        "wv": rw(keys[4], (D, Dkv)),
        "wo": rw(keys[5], (D, D)),
        "q_norm_w": jnp.ones((1, D), jnp.float32),
        "q_norm_b": jnp.zeros((1, D), jnp.float32),
        "k_norm_w": jnp.ones((1, Dkv), jnp.float32),
        "k_norm_b": jnp.zeros((1, Dkv), jnp.float32),
        "ffn_norm_w": jnp.ones((1, D), jnp.float32),
        "w1": rw(keys[6], (D, H)),
        "w3": rw(keys[7], (D, H)),
        "w2": rw(keys[8], (H, D)),
    }
    x = jax.random.normal(keys[9], (B, S, D), jnp.float32)
    adaln = jax.random.normal(keys[10], (B, Dc), jnp.float32)

    # freqs_cis (complex) represented as cos/sin of shape (S, head_dim // 2)
    inv_freq = 1.0 / (10000.0 ** (jnp.arange(0, hd, 2, dtype=jnp.float32) / hd))
    angles = jnp.arange(S, dtype=jnp.float32)[:, None] * inv_freq[None, :]
    return x, adaln, jnp.cos(angles), jnp.sin(angles), params


if __name__ == "__main__":
    eps = 1e-5
    # Case 1: tiny smoke config (dim=64, 4 heads / 2 kv heads, S=8; single tile
    #         everywhere).  Case 2: exercises multi-tile paths (nQ=nK=3 KV/query
    #         tiles for flash attention, 3 hidden tiles for the FFN).
    cases = [
        # (B,  S,   D,  n_heads, n_kv_heads, multiple_of, weight_scale)
        (2,   8,  64,  4,       2,          32,          0.1),
        (1, 384, 256,  4,       2,          256,         0.02),
    ]

    key = jax.random.PRNGKey(0)
    for idx, (B, S, D, nh, nkv, mo, ws) in enumerate(cases):
        key, sub = jax.random.split(key)
        x, adaln, cos, sin, params = _make_case(sub, B, S, D, nh, nkv, mo, ws)

        out = None
        last_err = None
        # Preferred config first; conservative fallback (double-buffered
        # weights, 64 MiB scoped VMEM) if the preferred one fails to lower.
        for kw in (dict(single_buffer_weights=True, vmem_limit=None),
                   dict(single_buffer_weights=False,
                        vmem_limit=64 * 1024 * 1024)):
            try:
                out = jax.block_until_ready(
                    transformer_block_pallas(x, adaln, cos, sin, params,
                                             n_heads=nh, n_kv_heads=nkv,
                                             eps=eps, **kw))
                break
            except Exception as e:  # fall back once, then re-raise
                last_err = e
        if out is None:
            raise last_err

        with jax.default_matmul_precision("float32"):
            ref = transformer_block_reference(x, adaln, cos, sin, params,
                                              n_heads=nh, n_kv_heads=nkv,
                                              eps=eps)
        ref = jax.block_until_ready(ref)

        assert out.shape == (B, S, D)
        max_err = float(jnp.max(jnp.abs(out - ref)))
        # Kernel matmuls run in bf16 with f32 accumulation.
        assert jnp.allclose(out, ref, rtol=5e-2, atol=5e-2), (idx, max_err)

    # TODO(synk): the `lazy` / `accelerate` paths (STE masking, per-timestep
    # lazy-learning heads, python-level cache branching on cache_attn/cache_mlp
    # and sample_cache side effects) use data-dependent host control flow and
    # are not expressed as kernels here.
    print("KERNEL_OK")
</pallas_src>

<mosaic_0001>
module attributes {stable_mosaic.version = 11 : i64} {
  func.func @_qkv_kernel(%arg0: i32, %arg1: i32, %arg2: memref<1x8x64xf32, #tpu.memory_space<vmem>>, %arg3: memref<1x3x64xf32, #tpu.memory_space<vmem>>, %arg4: memref<8x16xf32, #tpu.memory_space<vmem>>, %arg5: memref<8x16xf32, #tpu.memory_space<vmem>>, %arg6: memref<1x64xf32, #tpu.memory_space<vmem>>, %arg7: memref<64x64xbf16, #tpu.memory_space<vmem>>, %arg8: memref<64x32xbf16, #tpu.memory_space<vmem>>, %arg9: memref<64x32xbf16, #tpu.memory_space<vmem>>, %arg10: memref<1x64xf32, #tpu.memory_space<vmem>>, %arg11: memref<1x64xf32, #tpu.memory_space<vmem>>, %arg12: memref<1x32xf32, #tpu.memory_space<vmem>>, %arg13: memref<1x32xf32, #tpu.memory_space<vmem>>, %arg14: memref<1x8x64xbf16, #tpu.memory_space<vmem>>, %arg15: memref<1x8x32xbf16, #tpu.memory_space<vmem>>, %arg16: memref<1x8x32xbf16, #tpu.memory_space<vmem>>) attributes {dimension_semantics = [#tpu.dimension_semantics<parallel>, #tpu.dimension_semantics<parallel>], iteration_bounds = array<i64: 2, 1>, scalar_prefetch = 0 : i64, scratch_operands = 0 : i64, tpu.core_type = #tpu.core_type<tc>, window_params = [{transform_indices = @transform_0, window_bounds = array<i64: 1, 8, 64>}, {transform_indices = @transform_1, window_bounds = array<i64: 1, 3, 64>}, {transform_indices = @transform_2, window_bounds = array<i64: 8, 16>}, {transform_indices = @transform_3, window_bounds = array<i64: 8, 16>}, {pipeline_mode = #tpu.pipeline_mode<synchronous>, transform_indices = @transform_4, window_bounds = array<i64: 1, 64>}, {pipeline_mode = #tpu.pipeline_mode<synchronous>, transform_indices = @transform_5, window_bounds = array<i64: 64, 64>}, {pipeline_mode = #tpu.pipeline_mode<synchronous>, transform_indices = @transform_6, window_bounds = array<i64: 64, 32>}, {pipeline_mode = #tpu.pipeline_mode<synchronous>, transform_indices = @transform_7, window_bounds = array<i64: 64, 32>}, {pipeline_mode = #tpu.pipeline_mode<synchronous>, transform_indices = @transform_8, window_bounds = array<i64: 1, 64>}, {pipeline_mode = #tpu.pipeline_mode<synchronous>, transform_indices = @transform_9, window_bounds = array<i64: 1, 64>}, {pipeline_mode = #tpu.pipeline_mode<synchronous>, transform_indices = @transform_10, window_bounds = array<i64: 1, 32>}, {pipeline_mode = #tpu.pipeline_mode<synchronous>, transform_indices = @transform_11, window_bounds = array<i64: 1, 32>}, {transform_indices = @transform_12, window_bounds = array<i64: 1, 8, 64>}, {transform_indices = @transform_13, window_bounds = array<i64: 1, 8, 32>}, {transform_indices = @transform_14, window_bounds = array<i64: 1, 8, 32>}]} {
    %c0 = arith.constant 0 : index
    %c0_0 = arith.constant 0 : index
    %c0_1 = arith.constant 0 : index
    %0 = vector.load %arg2[%c0, %c0_0, %c0_1] : memref<1x8x64xf32, #tpu.memory_space<vmem>>, vector<1x8x64xf32>
    %1 = vector.shape_cast %0 : vector<1x8x64xf32> to vector<8x64xf32>
    %c0_2 = arith.constant 0 : index
    %c0_3 = arith.constant 0 : index
    %c0_4 = arith.constant 0 : index
    %2 = vector.load %arg3[%c0_2, %c0_3, %c0_4] : memref<1x3x64xf32, #tpu.memory_space<vmem>>, vector<1x3x64xf32>
    %3 = vector.shape_cast %2 : vector<1x3x64xf32> to vector<3x64xf32>
    %4 = vector.extract_strided_slice %3 {offsets = [0, 0], sizes = [1, 64], strides = [1, 1]} : vector<3x64xf32> to vector<1x64xf32>
    %5 = vector.extract_strided_slice %3 {offsets = [1, 0], sizes = [1, 64], strides = [1, 1]} : vector<3x64xf32> to vector<1x64xf32>
    %6 = arith.mulf %1, %1 : vector<8x64xf32>
    %cst = arith.constant dense<0.000000e+00> : vector<8xf32>
    %7 = vector.multi_reduction <add>, %6, %cst [1] : vector<8x64xf32> to vector<8xf32>
    %8 = vector.shape_cast %7 : vector<8xf32> to vector<8x1xf32>
    %cst_5 = arith.constant 6.400000e+01 : f32
    %9 = vector.broadcast %cst_5 : f32 to vector<8x1xf32>
    %10 = arith.divf %8, %9 : vector<8x1xf32>
    %cst_6 = arith.constant 9.99999974E-6 : f32
    %11 = vector.broadcast %cst_6 : f32 to vector<8x1xf32>
    %12 = arith.addf %10, %11 : vector<8x1xf32>
    %13 = math.rsqrt %12 : vector<8x1xf32>
    %14 = vector.broadcast %13 : vector<8x1xf32> to vector<8x64xf32>
    %15 = arith.mulf %1, %14 : vector<8x64xf32>
    %c0_7 = arith.constant 0 : index
    %c0_8 = arith.constant 0 : index
    %16 = vector.load %arg6[%c0_7, %c0_8] : memref<1x64xf32, #tpu.memory_space<vmem>>, vector<1x64xf32>
    %17 = vector.broadcast %16 : vector<1x64xf32> to vector<8x64xf32>
    %18 = arith.mulf %15, %17 : vector<8x64xf32>
    %cst_9 = arith.constant 1.000000e+00 : f32
    %19 = vector.broadcast %cst_9 : f32 to vector<1x64xf32>
    %20 = arith.addf %19, %5 : vector<1x64xf32>
    %21 = vector.broadcast %20 : vector<1x64xf32> to vector<8x64xf32>
    %22 = arith.mulf %18, %21 : vector<8x64xf32>
    %23 = vector.broadcast %4 : vector<1x64xf32> to vector<8x64xf32>
    %24 = arith.addf %22, %23 : vector<8x64xf32>
    %25 = arith.truncf %24 : vector<8x64xf32> to vector<8x64xbf16>
    %c0_10 = arith.constant 0 : index
    %c0_11 = arith.constant 0 : index
    %26 = vector.load %arg7[%c0_10, %c0_11] : memref<64x64xbf16, #tpu.memory_space<vmem>>, vector<64x64xbf16>
    %cst_12 = arith.constant dense<0.000000e+00> : vector<8x64xf32>
    %27 = tpu.matmul %25, %26, %cst_12 {dimension_numbers = #tpu.dot_dimension_numbers<[1], [0], [0], [1], [0, 0, 1, 1], [], []>} : vector<8x64xbf16>, vector<64x64xbf16>, vector<8x64xf32> -> vector<8x64xf32>
    %c0_13 = arith.constant 0 : index
    %c0_14 = arith.constant 0 : index
    %28 = vector.load %arg8[%c0_13, %c0_14] : memref<64x32xbf16, #tpu.memory_space<vmem>>, vector<64x32xbf16>
    %cst_15 = arith.constant dense<0.000000e+00> : vector<8x32xf32>
    %29 = tpu.matmul %25, %28, %cst_15 {dimension_numbers = #tpu.dot_dimension_numbers<[1], [0], [0], [1], [0, 0, 1, 1], [], []>} : vector<8x64xbf16>, vector<64x32xbf16>, vector<8x32xf32> -> vector<8x32xf32>
    %c0_16 = arith.constant 0 : index
    %c0_17 = arith.constant 0 : index
    %30 = vector.load %arg9[%c0_16, %c0_17] : memref<64x32xbf16, #tpu.memory_space<vmem>>, vector<64x32xbf16>
    %cst_18 = arith.constant dense<0.000000e+00> : vector<8x32xf32>
    %31 = tpu.matmul %25, %30, %cst_18 {dimension_numbers = #tpu.dot_dimension_numbers<[1], [0], [0], [1], [0, 0, 1, 1], [], []>} : vector<8x64xbf16>, vector<64x32xbf16>, vector<8x32xf32> -> vector<8x32xf32>
    %c0_19 = arith.constant 0 : index
    %c0_20 = arith.constant 0 : index
    %32 = vector.load %arg10[%c0_19, %c0_20] : memref<1x64xf32, #tpu.memory_space<vmem>>, vector<1x64xf32>
    %c0_21 = arith.constant 0 : index
    %c0_22 = arith.constant 0 : index
    %33 = vector.load %arg11[%c0_21, %c0_22] : memref<1x64xf32, #tpu.memory_space<vmem>>, vector<1x64xf32>
    %cst_23 = arith.constant dense<0.000000e+00> : vector<8xf32>
    %34 = vector.multi_reduction <add>, %27, %cst_23 [1] : vector<8x64xf32> to vector<8xf32>
    %35 = vector.shape_cast %34 : vector<8xf32> to vector<8x1xf32>
    %cst_24 = arith.constant 6.400000e+01 : f32
    %36 = vector.broadcast %cst_24 : f32 to vector<8x1xf32>
    %37 = arith.divf %35, %36 : vector<8x1xf32>
    %38 = vector.broadcast %37 : vector<8x1xf32> to vector<8x64xf32>
    %39 = arith.subf %27, %38 : vector<8x64xf32>
    %40 = vector.broadcast %37 : vector<8x1xf32> to vector<8x64xf32>
    %41 = arith.subf %27, %40 : vector<8x64xf32>
    %42 = arith.mulf %39, %41 : vector<8x64xf32>
    %cst_25 = arith.constant dense<0.000000e+00> : vector<8xf32>
    %43 = vector.multi_reduction <add>, %42, %cst_25 [1] : vector<8x64xf32> to vector<8xf32>
    %44 = vector.shape_cast %43 : vector<8xf32> to vector<8x1xf32>
    %cst_26 = arith.constant 6.400000e+01 : f32
    %45 = vector.broadcast %cst_26 : f32 to vector<8x1xf32>
    %46 = arith.divf %44, %45 : vector<8x1xf32>
    %47 = vector.broadcast %37 : vector<8x1xf32> to vector<8x64xf32>
    %48 = arith.subf %27, %47 : vector<8x64xf32>
    %cst_27 = arith.constant 9.99999974E-6 : f32
    %49 = vector.broadcast %cst_27 : f32 to vector<8x1xf32>
    %50 = arith.addf %46, %49 : vector<8x1xf32>
    %51 = math.rsqrt %50 : vector<8x1xf32>
    %52 = vector.broadcast %51 : vector<8x1xf32> to vector<8x64xf32>
    %53 = arith.mulf %48, %52 : vector<8x64xf32>
    %54 = vector.broadcast %32 : vector<1x64xf32> to vector<8x64xf32>
    %55 = arith.mulf %53, %54 : vector<8x64xf32>
    %56 = vector.broadcast %33 : vector<1x64xf32> to vector<8x64xf32>
    %57 = arith.addf %55, %56 : vector<8x64xf32>
    %c0_28 = arith.constant 0 : index
    %c0_29 = arith.constant 0 : index
    %58 = vector.load %arg12[%c0_28, %c0_29] : memref<1x32xf32, #tpu.memory_space<vmem>>, vector<1x32xf32>
    %c0_30 = arith.constant 0 : index
    %c0_31 = arith.constant 0 : index
    %59 = vector.load %arg13[%c0_30, %c0_31] : memref<1x32xf32, #tpu.memory_space<vmem>>, vector<1x32xf32>
    %cst_32 = arith.constant dense<0.000000e+00> : vector<8xf32>
    %60 = vector.multi_reduction <add>, %29, %cst_32 [1] : vector<8x32xf32> to vector<8xf32>
    %61 = vector.shape_cast %60 : vector<8xf32> to vector<8x1xf32>
    %cst_33 = arith.constant 3.200000e+01 : f32
    %62 = vector.broadcast %cst_33 : f32 to vector<8x1xf32>
    %63 = arith.divf %61, %62 : vector<8x1xf32>
    %64 = vector.broadcast %63 : vector<8x1xf32> to vector<8x32xf32>
    %65 = arith.subf %29, %64 : vector<8x32xf32>
    %66 = vector.broadcast %63 : vector<8x1xf32> to vector<8x32xf32>
    %67 = arith.subf %29, %66 : vector<8x32xf32>
    %68 = arith.mulf %65, %67 : vector<8x32xf32>
    %cst_34 = arith.constant dense<0.000000e+00> : vector<8xf32>
    %69 = vector.multi_reduction <add>, %68, %cst_34 [1] : vector<8x32xf32> to vector<8xf32>
    %70 = vector.shape_cast %69 : vector<8xf32> to vector<8x1xf32>
    %cst_35 = arith.constant 3.200000e+01 : f32
    %71 = vector.broadcast %cst_35 : f32 to vector<8x1xf32>
    %72 = arith.divf %70, %71 : vector<8x1xf32>
    %73 = vector.broadcast %63 : vector<8x1xf32> to vector<8x32xf32>
    %74 = arith.subf %29, %73 : vector<8x32xf32>
    %cst_36 = arith.constant 9.99999974E-6 : f32
    %75 = vector.broadcast %cst_36 : f32 to vector<8x1xf32>
    %76 = arith.addf %72, %75 : vector<8x1xf32>
    %77 = math.rsqrt %76 : vector<8x1xf32>
    %78 = vector.broadcast %77 : vector<8x1xf32> to vector<8x32xf32>
    %79 = arith.mulf %74, %78 : vector<8x32xf32>
    %80 = vector.broadcast %58 : vector<1x32xf32> to vector<8x32xf32>
    %81 = arith.mulf %79, %80 : vector<8x32xf32>
    %82 = vector.broadcast %59 : vector<1x32xf32> to vector<8x32xf32>
    %83 = arith.addf %81, %82 : vector<8x32xf32>
    %c0_37 = arith.constant 0 : index
    %c0_38 = arith.constant 0 : index
    %84 = vector.load %arg4[%c0_37, %c0_38] : memref<8x16xf32, #tpu.memory_space<vmem>>, vector<8x16xf32>
    %c0_39 = arith.constant 0 : index
    %c0_40 = arith.constant 0 : index
    %85 = vector.load %arg5[%c0_39, %c0_40] : memref<8x16xf32, #tpu.memory_space<vmem>>, vector<8x16xf32>
    %86 = tpu.concatenate %84, %84, %84, %84 in 1 : vector<8x16xf32>, vector<8x16xf32>, vector<8x16xf32>, vector<8x16xf32> -> vector<8x64xf32>
    %87 = tpu.concatenate %85, %85, %85, %85 in 1 : vector<8x16xf32>, vector<8x16xf32>, vector<8x16xf32>, vector<8x16xf32> -> vector<8x64xf32>
    %88 = tpu.iota {dimensions = array<i32: 1>} : vector<8x64xi32>
    %c2_i32 = arith.constant 2 : i32
    %c0_i32 = arith.constant 0 : i32
    %89 = arith.cmpi eq, %c2_i32, %c0_i32 : i32
    %c1_i32 = arith.constant 1 : i32
    %90 = arith.select %89, %c1_i32, %c2_i32 : i32
    %91 = vector.broadcast %90 : i32 to vector<8x64xi32>
    %92 = arith.remsi %88, %91 : vector<8x64xi32>
    %c0_i32_41 = arith.constant 0 : i32
    %93 = vector.broadcast %c0_i32_41 : i32 to vector<8x64xi32>
    %94 = arith.cmpi ne, %92, %93 : vector<8x64xi32>
    %c0_i32_42 = arith.constant 0 : i32
    %95 = vector.broadcast %c0_i32_42 : i32 to vector<8x64xi32>
    %96 = arith.cmpi slt, %92, %95 : vector<8x64xi32>
    %c0_i32_43 = arith.constant 0 : i32
    %97 = arith.cmpi slt, %90, %c0_i32_43 : i32
    %98 = vector.broadcast %97 : i1 to vector<8x64xi1>
    %99 = vector.broadcast %98 : vector<8x64xi1> to vector<8x64xi1>
    %100 = arith.xori %96, %99 : vector<8x64xi1>
    %101 = arith.andi %100, %94 : vector<8x64xi1>
    %102 = vector.broadcast %90 : i32 to vector<8x64xi32>
    %103 = arith.addi %92, %102 : vector<8x64xi32>
    %104 = arith.select %101, %103, %92 : vector<8x64xi1>, vector<8x64xi32>
    %c0_i32_44 = arith.constant 0 : i32
    %105 = vector.broadcast %c0_i32_44 : i32 to vector<8x64xi32>
    %106 = arith.cmpi eq, %104, %105 : vector<8x64xi32>
    %c63_i32 = arith.constant 63 : i32
    %107 = tpu.dynamic_rotate %57 by %c63_i32 dim 1 : vector<8x64xf32>, i32 -> vector<8x64xf32>
    %c1_i32_45 = arith.constant 1 : i32
    %108 = tpu.dynamic_rotate %57 by %c1_i32_45 dim 1 : vector<8x64xf32>, i32 -> vector<8x64xf32>
    %109 = arith.select %106, %107, %108 : vector<8x64xi1>, vector<8x64xf32>
    %110 = arith.mulf %57, %86 : vector<8x64xf32>
    %111 = arith.mulf %109, %87 : vector<8x64xf32>
    %112 = arith.addf %110, %111 : vector<8x64xf32>
    %113 = arith.truncf %112 : vector<8x64xf32> to vector<8x64xbf16>
    %c0_46 = arith.constant 0 : index
    %c0_47 = arith.constant 0 : index
    %c0_48 = arith.constant 0 : index
    %114 = vector.load %arg14[%c0_46, %c0_47, %c0_48] : memref<1x8x64xbf16, #tpu.memory_space<vmem>>, vector<1x8x64xbf16>
    %115 = vector.shape_cast %114 : vector<1x8x64xbf16> to vector<8x64xbf16>
    %116 = vector.shape_cast %113 : vector<8x64xbf16> to vector<1x8x64xbf16>
    tpu.vector_store %arg14[%c0_46, %c0_47, %c0_48], %116 {strides = array<i32>} : memref<1x8x64xbf16, #tpu.memory_space<vmem>>, vector<1x8x64xbf16>,
    %117 = tpu.concatenate %84, %84 in 1 : vector<8x16xf32>, vector<8x16xf32> -> vector<8x32xf32>
    %118 = tpu.concatenate %85, %85 in 1 : vector<8x16xf32>, vector<8x16xf32> -> vector<8x32xf32>
    %119 = tpu.iota {dimensions = array<i32: 1>} : vector<8x32xi32>
    %c2_i32_49 = arith.constant 2 : i32
    %c0_i32_50 = arith.constant 0 : i32
    %120 = arith.cmpi eq, %c2_i32_49, %c0_i32_50 : i32
    %c1_i32_51 = arith.constant 1 : i32
    %121 = arith.select %120, %c1_i32_51, %c2_i32_49 : i32
    %122 = vector.broadcast %121 : i32 to vector<8x32xi32>
    %123 = arith.remsi %119, %122 : vector<8x32xi32>
    %c0_i32_52 = arith.constant 0 : i32
    %124 = vector.broadcast %c0_i32_52 : i32 to vector<8x32xi32>
    %125 = arith.cmpi ne, %123, %124 : vector<8x32xi32>
    %c0_i32_53 = arith.constant 0 : i32
    %126 = vector.broadcast %c0_i32_53 : i32 to vector<8x32xi32>
    %127 = arith.cmpi slt, %123, %126 : vector<8x32xi32>
    %c0_i32_54 = arith.constant 0 : i32
    %128 = arith.cmpi slt, %121, %c0_i32_54 : i32
    %129 = vector.broadcast %128 : i1 to vector<8x32xi1>
    %130 = vector.broadcast %129 : vector<8x32xi1> to vector<8x32xi1>
    %131 = arith.xori %127, %130 : vector<8x32xi1>
    %132 = arith.andi %131, %125 : vector<8x32xi1>
    %133 = vector.broadcast %121 : i32 to vector<8x32xi32>
    %134 = arith.addi %123, %133 : vector<8x32xi32>
    %135 = arith.select %132, %134, %123 : vector<8x32xi1>, vector<8x32xi32>
    %c0_i32_55 = arith.constant 0 : i32
    %136 = vector.broadcast %c0_i32_55 : i32 to vector<8x32xi32>
    %137 = arith.cmpi eq, %135, %136 : vector<8x32xi32>
    %c31_i32 = arith.constant 31 : i32
    %138 = tpu.dynamic_rotate %83 by %c31_i32 dim 1 : vector<8x32xf32>, i32 -> vector<8x32xf32>
    %c1_i32_56 = arith.constant 1 : i32
    %139 = tpu.dynamic_rotate %83 by %c1_i32_56 dim 1 : vector<8x32xf32>, i32 -> vector<8x32xf32>
    %140 = arith.select %137, %138, %139 : vector<8x32xi1>, vector<8x32xf32>
    %141 = arith.mulf %83, %117 : vector<8x32xf32>
    %142 = arith.mulf %140, %118 : vector<8x32xf32>
    %143 = arith.addf %141, %142 : vector<8x32xf32>
    %144 = arith.truncf %143 : vector<8x32xf32> to vector<8x32xbf16>
    %c0_57 = arith.constant 0 : index
    %c0_58 = arith.constant 0 : index
    %c0_59 = arith.constant 0 : index
    %145 = vector.load %arg15[%c0_57, %c0_58, %c0_59] : memref<1x8x32xbf16, #tpu.memory_space<vmem>>, vector<1x8x32xbf16>
    %146 = vector.shape_cast %145 : vector<1x8x32xbf16> to vector<8x32xbf16>
    %147 = vector.shape_cast %144 : vector<8x32xbf16> to vector<1x8x32xbf16>
    tpu.vector_store %arg15[%c0_57, %c0_58, %c0_59], %147 {strides = array<i32>} : memref<1x8x32xbf16, #tpu.memory_space<vmem>>, vector<1x8x32xbf16>,
    %148 = arith.truncf %31 : vector<8x32xf32> to vector<8x32xbf16>
    %c0_60 = arith.constant 0 : index
    %c0_61 = arith.constant 0 : index
    %c0_62 = arith.constant 0 : index
    %149 = vector.load %arg16[%c0_60, %c0_61, %c0_62] : memref<1x8x32xbf16, #tpu.memory_space<vmem>>, vector<1x8x32xbf16>
    %150 = vector.shape_cast %149 : vector<1x8x32xbf16> to vector<8x32xbf16>
    %151 = vector.shape_cast %148 : vector<8x32xbf16> to vector<1x8x32xbf16>
    tpu.vector_store %arg16[%c0_60, %c0_61, %c0_62], %151 {strides = array<i32>} : memref<1x8x32xbf16, #tpu.memory_space<vmem>>, vector<1x8x32xbf16>,
    return
  }
  func.func @transform_0(%arg0: i32, %arg1: i32) -> (i32, i32, i32) {
    %c0_i32 = arith.constant 0 : i32
    %c0_i32_0 = arith.constant 0 : i32
    return %arg0, %arg1, %c0_i32 : i32, i32, i32
  }
  func.func @transform_1(%arg0: i32, %arg1: i32) -> (i32, i32, i32) {
    %c0_i32 = arith.constant 0 : i32
    %c0_i32_0 = arith.constant 0 : i32
    %c0_i32_1 = arith.constant 0 : i32
    return %arg0, %c0_i32, %c0_i32_0 : i32, i32, i32
  }
  func.func @transform_2(%arg0: i32, %arg1: i32) -> (i32, i32) {
    %c0_i32 = arith.constant 0 : i32
    %c0_i32_0 = arith.constant 0 : i32
    return %arg1, %c0_i32 : i32, i32
  }
  func.func @transform_3(%arg0: i32, %arg1: i32) -> (i32, i32) {
    %c0_i32 = arith.constant 0 : i32
    %c0_i32_0 = arith.constant 0 : i32
    return %arg1, %c0_i32 : i32, i32
  }
  func.func @transform_4(%arg0: i32, %arg1: i32) -> (i32, i32) {
    %c0_i32 = arith.constant 0 : i32
    %c0_i32_0 = arith.constant 0 : i32
    %c0_i32_1 = arith.constant 0 : i32
    return %c0_i32, %c0_i32_0 : i32, i32
  }
  func.func @transform_5(%arg0: i32, %arg1: i32) -> (i32, i32) {
    %c0_i32 = arith.constant 0 : i32
    %c0_i32_0 = arith.constant 0 : i32
    %c0_i32_1 = arith.constant 0 : i32
    return %c0_i32, %c0_i32_0 : i32, i32
  }
  func.func @transform_6(%arg0: i32, %arg1: i32) -> (i32, i32) {
    %c0_i32 = arith.constant 0 : i32
    %c0_i32_0 = arith.constant 0 : i32
    %c0_i32_1 = arith.constant 0 : i32
    return %c0_i32, %c0_i32_0 : i32, i32
  }
  func.func @transform_7(%arg0: i32, %arg1: i32) -> (i32, i32) {
    %c0_i32 = arith.constant 0 : i32
    %c0_i32_0 = arith.constant 0 : i32
    %c0_i32_1 = arith.constant 0 : i32
    return %c0_i32, %c0_i32_0 : i32, i32
  }
  func.func @transform_8(%arg0: i32, %arg1: i32) -> (i32, i32) {
    %c0_i32 = arith.constant 0 : i32
    %c0_i32_0 = arith.constant 0 : i32
    %c0_i32_1 = arith.constant 0 : i32
    return %c0_i32, %c0_i32_0 : i32, i32
  }
  func.func @transform_9(%arg0: i32, %arg1: i32) -> (i32, i32) {
    %c0_i32 = arith.constant 0 : i32
    %c0_i32_0 = arith.constant 0 : i32
    %c0_i32_1 = arith.constant 0 : i32
    return %c0_i32, %c0_i32_0 : i32, i32
  }
  func.func @transform_10(%arg0: i32, %arg1: i32) -> (i32, i32) {
    %c0_i32 = arith.constant 0 : i32
    %c0_i32_0 = arith.constant 0 : i32
    %c0_i32_1 = arith.constant 0 : i32
    return %c0_i32, %c0_i32_0 : i32, i32
  }
  func.func @transform_11(%arg0: i32, %arg1: i32) -> (i32, i32) {
    %c0_i32 = arith.constant 0 : i32
    %c0_i32_0 = arith.constant 0 : i32
    %c0_i32_1 = arith.constant 0 : i32
    return %c0_i32, %c0_i32_0 : i32, i32
  }
  func.func @transform_12(%arg0: i32, %arg1: i32) -> (i32, i32, i32) {
    %c0_i32 = arith.constant 0 : i32
    %c0_i32_0 = arith.constant 0 : i32
    return %arg0, %arg1, %c0_i32 : i32, i32, i32
  }
  func.func @transform_13(%arg0: i32, %arg1: i32) -> (i32, i32, i32) {
    %c0_i32 = arith.constant 0 : i32
    %c0_i32_0 = arith.constant 0 : i32
    return %arg0, %arg1, %c0_i32 : i32, i32, i32
  }
  func.func @transform_14(%arg0: i32, %arg1: i32) -> (i32, i32, i32) {
    %c0_i32 = arith.constant 0 : i32
    %c0_i32_0 = arith.constant 0 : i32
    return %arg0, %arg1, %c0_i32 : i32, i32, i32
  }
}

module attributes {stable_mosaic.version = 11 : i64} {
  func.func @_qkv_kernel(%arg0: i32, %arg1: i32, %arg2: memref<1x8x64xf32, #tpu.memory_space<vmem>>, %arg3: memref<1x3x64xf32, #tpu.memory_space<vmem>>, %arg4: memref<8x16xf32, #tpu.memory_space<vmem>>, %arg5: memref<8x16xf32, #tpu.memory_space<vmem>>, %arg6: memref<1x64xf32, #tpu.memory_space<vmem>>, %arg7: memref<64x64xbf16, #tpu.memory_space<vmem>>, %arg8: memref<64x32xbf16, #tpu.memory_space<vmem>>, %arg9: memref<64x32xbf16, #tpu.memory_space<vmem>>, %arg10: memref<1x64xf32, #tpu.memory_space<vmem>>, %arg11: memref<1x64xf32, #tpu.memory_space<vmem>>, %arg12: memref<1x32xf32, #tpu.memory_space<vmem>>, %arg13: memref<1x32xf32, #tpu.memory_space<vmem>>, %arg14: memref<1x8x64xbf16, #tpu.memory_space<vmem>>, %arg15: memref<1x8x32xbf16, #tpu.memory_space<vmem>>, %arg16: memref<1x8x32xbf16, #tpu.memory_space<vmem>>) attributes {dimension_semantics = [#tpu.dimension_semantics<parallel>, #tpu.dimension_semantics<parallel>], iteration_bounds = array<i64: 2, 1>, scalar_prefetch = 0 : i64, scratch_operands = 0 : i64, tpu.core_type = #tpu.core_type<tc>, window_params = [{transform_indices = @transform_0, window_bounds = array<i64: 1, 8, 64>}, {transform_indices = @transform_1, window_bounds = array<i64: 1, 3, 64>}, {transform_indices = @transform_2, window_bounds = array<i64: 8, 16>}, {transform_indices = @transform_3, window_bounds = array<i64: 8, 16>}, {pipeline_mode = #tpu.pipeline_mode<synchronous>, transform_indices = @transform_4, window_bounds = array<i64: 1, 64>}, {pipeline_mode = #tpu.pipeline_mode<synchronous>, transform_indices = @transform_5, window_bounds = array<i64: 64, 64>}, {pipeline_mode = #tpu.pipeline_mode<synchronous>, transform_indices = @transform_6, window_bounds = array<i64: 64, 32>}, {pipeline_mode = #tpu.pipeline_mode<synchronous>, transform_indices = @transform_7, window_bounds = array<i64: 64, 32>}, {pipeline_mode = #tpu.pipeline_mode<synchronous>, transform_indices = @transform_8, window_bounds = array<i64: 1, 64>}, {pipeline_mode = #tpu.pipeline_mode<synchronous>, transform_indices = @transform_9, window_bounds = array<i64: 1, 64>}, {pipeline_mode = #tpu.pipeline_mode<synchronous>, transform_indices = @transform_10, window_bounds = array<i64: 1, 32>}, {pipeline_mode = #tpu.pipeline_mode<synchronous>, transform_indices = @transform_11, window_bounds = array<i64: 1, 32>}, {transform_indices = @transform_12, window_bounds = array<i64: 1, 8, 64>}, {transform_indices = @transform_13, window_bounds = array<i64: 1, 8, 32>}, {transform_indices = @transform_14, window_bounds = array<i64: 1, 8, 32>}]} {
    %c0 = arith.constant 0 : index
    %c0_0 = arith.constant 0 : index
    %c0_1 = arith.constant 0 : index
    %0 = vector.load %arg2[%c0, %c0_0, %c0_1] : memref<1x8x64xf32, #tpu.memory_space<vmem>>, vector<1x8x64xf32>
    %1 = vector.shape_cast %0 : vector<1x8x64xf32> to vector<8x64xf32>
    %c0_2 = arith.constant 0 : index
    %c0_3 = arith.constant 0 : index
    %c0_4 = arith.constant 0 : index
    %2 = vector.load %arg3[%c0_2, %c0_3, %c0_4] : memref<1x3x64xf32, #tpu.memory_space<vmem>>, vector<1x3x64xf32>
    %3 = vector.shape_cast %2 : vector<1x3x64xf32> to vector<3x64xf32>
    %4 = vector.extract_strided_slice %3 {offsets = [0, 0], sizes = [1, 64], strides = [1, 1]} : vector<3x64xf32> to vector<1x64xf32>
    %5 = vector.extract_strided_slice %3 {offsets = [1, 0], sizes = [1, 64], strides = [1, 1]} : vector<3x64xf32> to vector<1x64xf32>
    %6 = arith.mulf %1, %1 : vector<8x64xf32>
    %cst = arith.constant dense<0.000000e+00> : vector<8xf32>
    %7 = vector.multi_reduction <add>, %6, %cst [1] : vector<8x64xf32> to vector<8xf32>
    %8 = vector.shape_cast %7 : vector<8xf32> to vector<8x1xf32>
    %cst_5 = arith.constant 6.400000e+01 : f32
    %9 = vector.broadcast %cst_5 : f32 to vector<8x1xf32>
    %10 = arith.divf %8, %9 : vector<8x1xf32>
    %cst_6 = arith.constant 9.99999974E-6 : f32
    %11 = vector.broadcast %cst_6 : f32 to vector<8x1xf32>
    %12 = arith.addf %10, %11 : vector<8x1xf32>
    %13 = math.rsqrt %12 : vector<8x1xf32>
    %14 = vector.broadcast %13 : vector<8x1xf32> to vector<8x64xf32>
    %15 = arith.mulf %1, %14 : vector<8x64xf32>
    %c0_7 = arith.constant 0 : index
    %c0_8 = arith.constant 0 : index
    %16 = vector.load %arg6[%c0_7, %c0_8] : memref<1x64xf32, #tpu.memory_space<vmem>>, vector<1x64xf32>
    %17 = vector.broadcast %16 : vector<1x64xf32> to vector<8x64xf32>
    %18 = arith.mulf %15, %17 : vector<8x64xf32>
    %cst_9 = arith.constant 1.000000e+00 : f32
    %19 = vector.broadcast %cst_9 : f32 to vector<1x64xf32>
    %20 = arith.addf %19, %5 : vector<1x64xf32>
    %21 = vector.broadcast %20 : vector<1x64xf32> to vector<8x64xf32>
    %22 = arith.mulf %18, %21 : vector<8x64xf32>
    %23 = vector.broadcast %4 : vector<1x64xf32> to vector<8x64xf32>
    %24 = arith.addf %22, %23 : vector<8x64xf32>
    %25 = arith.truncf %24 : vector<8x64xf32> to vector<8x64xbf16>
    %c0_10 = arith.constant 0 : index
    %c0_11 = arith.constant 0 : index
    %26 = vector.load %arg7[%c0_10, %c0_11] : memref<64x64xbf16, #tpu.memory_space<vmem>>, vector<64x64xbf16>
    %cst_12 = arith.constant dense<0.000000e+00> : vector<8x64xf32>
    %27 = tpu.matmul %25, %26, %cst_12 {dimension_numbers = #tpu.dot_dimension_numbers<[1], [0], [0], [1], [0, 0, 1, 1], [], []>} : vector<8x64xbf16>, vector<64x64xbf16>, vector<8x64xf32> -> vector<8x64xf32>
    %c0_13 = arith.constant 0 : index
    %c0_14 = arith.constant 0 : index
    %28 = vector.load %arg8[%c0_13, %c0_14] : memref<64x32xbf16, #tpu.memory_space<vmem>>, vector<64x32xbf16>
    %cst_15 = arith.constant dense<0.000000e+00> : vector<8x32xf32>
    %29 = tpu.matmul %25, %28, %cst_15 {dimension_numbers = #tpu.dot_dimension_numbers<[1], [0], [0], [1], [0, 0, 1, 1], [], []>} : vector<8x64xbf16>, vector<64x32xbf16>, vector<8x32xf32> -> vector<8x32xf32>
    %c0_16 = arith.constant 0 : index
    %c0_17 = arith.constant 0 : index
    %30 = vector.load %arg9[%c0_16, %c0_17] : memref<64x32xbf16, #tpu.memory_space<vmem>>, vector<64x32xbf16>
    %cst_18 = arith.constant dense<0.000000e+00> : vector<8x32xf32>
    %31 = tpu.matmul %25, %30, %cst_18 {dimension_numbers = #tpu.dot_dimension_numbers<[1], [0], [0], [1], [0, 0, 1, 1], [], []>} : vector<8x64xbf16>, vector<64x32xbf16>, vector<8x32xf32> -> vector<8x32xf32>
    %c0_19 = arith.constant 0 : index
    %c0_20 = arith.constant 0 : index
    %32 = vector.load %arg10[%c0_19, %c0_20] : memref<1x64xf32, #tpu.memory_space<vmem>>, vector<1x64xf32>
    %c0_21 = arith.constant 0 : index
    %c0_22 = arith.constant 0 : index
    %33 = vector.load %arg11[%c0_21, %c0_22] : memref<1x64xf32, #tpu.memory_space<vmem>>, vector<1x64xf32>
    %cst_23 = arith.constant dense<0.000000e+00> : vector<8xf32>
    %34 = vector.multi_reduction <add>, %27, %cst_23 [1] : vector<8x64xf32> to vector<8xf32>
    %35 = vector.shape_cast %34 : vector<8xf32> to vector<8x1xf32>
    %cst_24 = arith.constant 6.400000e+01 : f32
    %36 = vector.broadcast %cst_24 : f32 to vector<8x1xf32>
    %37 = arith.divf %35, %36 : vector<8x1xf32>
    %38 = vector.broadcast %37 : vector<8x1xf32> to vector<8x64xf32>
    %39 = arith.subf %27, %38 : vector<8x64xf32>
    %40 = vector.broadcast %37 : vector<8x1xf32> to vector<8x64xf32>
    %41 = arith.subf %27, %40 : vector<8x64xf32>
    %42 = arith.mulf %39, %41 : vector<8x64xf32>
    %cst_25 = arith.constant dense<0.000000e+00> : vector<8xf32>
    %43 = vector.multi_reduction <add>, %42, %cst_25 [1] : vector<8x64xf32> to vector<8xf32>
    %44 = vector.shape_cast %43 : vector<8xf32> to vector<8x1xf32>
    %cst_26 = arith.constant 6.400000e+01 : f32
    %45 = vector.broadcast %cst_26 : f32 to vector<8x1xf32>
    %46 = arith.divf %44, %45 : vector<8x1xf32>
    %47 = vector.broadcast %37 : vector<8x1xf32> to vector<8x64xf32>
    %48 = arith.subf %27, %47 : vector<8x64xf32>
    %cst_27 = arith.constant 9.99999974E-6 : f32
    %49 = vector.broadcast %cst_27 : f32 to vector<8x1xf32>
    %50 = arith.addf %46, %49 : vector<8x1xf32>
    %51 = math.rsqrt %50 : vector<8x1xf32>
    %52 = vector.broadcast %51 : vector<8x1xf32> to vector<8x64xf32>
    %53 = arith.mulf %48, %52 : vector<8x64xf32>
    %54 = vector.broadcast %32 : vector<1x64xf32> to vector<8x64xf32>
    %55 = arith.mulf %53, %54 : vector<8x64xf32>
    %56 = vector.broadcast %33 : vector<1x64xf32> to vector<8x64xf32>
    %57 = arith.addf %55, %56 : vector<8x64xf32>
    %c0_28 = arith.constant 0 : index
    %c0_29 = arith.constant 0 : index
    %58 = vector.load %arg12[%c0_28, %c0_29] : memref<1x32xf32, #tpu.memory_space<vmem>>, vector<1x32xf32>
    %c0_30 = arith.constant 0 : index
    %c0_31 = arith.constant 0 : index
    %59 = vector.load %arg13[%c0_30, %c0_31] : memref<1x32xf32, #tpu.memory_space<vmem>>, vector<1x32xf32>
    %cst_32 = arith.constant dense<0.000000e+00> : vector<8xf32>
    %60 = vector.multi_reduction <add>, %29, %cst_32 [1] : vector<8x32xf32> to vector<8xf32>
    %61 = vector.shape_cast %60 : vector<8xf32> to vector<8x1xf32>
    %cst_33 = arith.constant 3.200000e+01 : f32
    %62 = vector.broadcast %cst_33 : f32 to vector<8x1xf32>
    %63 = arith.divf %61, %62 : vector<8x1xf32>
    %64 = vector.broadcast %63 : vector<8x1xf32> to vector<8x32xf32>
    %65 = arith.subf %29, %64 : vector<8x32xf32>
    %66 = vector.broadcast %63 : vector<8x1xf32> to vector<8x32xf32>
    %67 = arith.subf %29, %66 : vector<8x32xf32>
    %68 = arith.mulf %65, %67 : vector<8x32xf32>
    %cst_34 = arith.constant dense<0.000000e+00> : vector<8xf32>
    %69 = vector.multi_reduction <add>, %68, %cst_34 [1] : vector<8x32xf32> to vector<8xf32>
    %70 = vector.shape_cast %69 : vector<8xf32> to vector<8x1xf32>
    %cst_35 = arith.constant 3.200000e+01 : f32
    %71 = vector.broadcast %cst_35 : f32 to vector<8x1xf32>
    %72 = arith.divf %70, %71 : vector<8x1xf32>
    %73 = vector.broadcast %63 : vector<8x1xf32> to vector<8x32xf32>
    %74 = arith.subf %29, %73 : vector<8x32xf32>
    %cst_36 = arith.constant 9.99999974E-6 : f32
    %75 = vector.broadcast %cst_36 : f32 to vector<8x1xf32>
    %76 = arith.addf %72, %75 : vector<8x1xf32>
    %77 = math.rsqrt %76 : vector<8x1xf32>
    %78 = vector.broadcast %77 : vector<8x1xf32> to vector<8x32xf32>
    %79 = arith.mulf %74, %78 : vector<8x32xf32>
    %80 = vector.broadcast %58 : vector<1x32xf32> to vector<8x32xf32>
    %81 = arith.mulf %79, %80 : vector<8x32xf32>
    %82 = vector.broadcast %59 : vector<1x32xf32> to vector<8x32xf32>
    %83 = arith.addf %81, %82 : vector<8x32xf32>
    %c0_37 = arith.constant 0 : index
    %c0_38 = arith.constant 0 : index
    %84 = vector.load %arg4[%c0_37, %c0_38] : memref<8x16xf32, #tpu.memory_space<vmem>>, vector<8x16xf32>
    %c0_39 = arith.constant 0 : index
    %c0_40 = arith.constant 0 : index
    %85 = vector.load %arg5[%c0_39, %c0_40] : memref<8x16xf32, #tpu.memory_space<vmem>>, vector<8x16xf32>
    %86 = tpu.concatenate %84, %84, %84, %84 in 1 : vector<8x16xf32>, vector<8x16xf32>, vector<8x16xf32>, vector<8x16xf32> -> vector<8x64xf32>
    %87 = tpu.concatenate %85, %85, %85, %85 in 1 : vector<8x16xf32>, vector<8x16xf32>, vector<8x16xf32>, vector<8x16xf32> -> vector<8x64xf32>
    %88 = tpu.iota {dimensions = array<i32: 1>} : vector<8x64xi32>
    %c2_i32 = arith.constant 2 : i32
    %c0_i32 = arith.constant 0 : i32
    %89 = arith.cmpi eq, %c2_i32, %c0_i32 : i32
    %c1_i32 = arith.constant 1 : i32
    %90 = arith.select %89, %c1_i32, %c2_i32 : i32
    %91 = vector.broadcast %90 : i32 to vector<8x64xi32>
    %92 = arith.remsi %88, %91 : vector<8x64xi32>
    %c0_i32_41 = arith.constant 0 : i32
    %93 = vector.broadcast %c0_i32_41 : i32 to vector<8x64xi32>
    %94 = arith.cmpi ne, %92, %93 : vector<8x64xi32>
    %c0_i32_42 = arith.constant 0 : i32
    %95 = vector.broadcast %c0_i32_42 : i32 to vector<8x64xi32>
    %96 = arith.cmpi slt, %92, %95 : vector<8x64xi32>
    %c0_i32_43 = arith.constant 0 : i32
    %97 = arith.cmpi slt, %90, %c0_i32_43 : i32
    %98 = vector.broadcast %97 : i1 to vector<8x64xi1>
    %99 = vector.broadcast %98 : vector<8x64xi1> to vector<8x64xi1>
    %100 = arith.xori %96, %99 : vector<8x64xi1>
    %101 = arith.andi %100, %94 : vector<8x64xi1>
    %102 = vector.broadcast %90 : i32 to vector<8x64xi32>
    %103 = arith.addi %92, %102 : vector<8x64xi32>
    %104 = arith.select %101, %103, %92 : vector<8x64xi1>, vector<8x64xi32>
    %c0_i32_44 = arith.constant 0 : i32
    %105 = vector.broadcast %c0_i32_44 : i32 to vector<8x64xi32>
    %106 = arith.cmpi eq, %104, %105 : vector<8x64xi32>
    %c63_i32 = arith.constant 63 : i32
    %107 = tpu.dynamic_rotate %57 by %c63_i32 dim 1 : vector<8x64xf32>, i32 -> vector<8x64xf32>
    %c1_i32_45 = arith.constant 1 : i32
    %108 = tpu.dynamic_rotate %57 by %c1_i32_45 dim 1 : vector<8x64xf32>, i32 -> vector<8x64xf32>
    %109 = arith.select %106, %107, %108 : vector<8x64xi1>, vector<8x64xf32>
    %110 = arith.mulf %57, %86 : vector<8x64xf32>
    %111 = arith.mulf %109, %87 : vector<8x64xf32>
    %112 = arith.addf %110, %111 : vector<8x64xf32>
    %113 = arith.truncf %112 : vector<8x64xf32> to vector<8x64xbf16>
    %c0_46 = arith.constant 0 : index
    %c0_47 = arith.constant 0 : index
    %c0_48 = arith.constant 0 : index
    %114 = vector.load %arg14[%c0_46, %c0_47, %c0_48] : memref<1x8x64xbf16, #tpu.memory_space<vmem>>, vector<1x8x64xbf16>
    %115 = vector.shape_cast %114 : vector<1x8x64xbf16> to vector<8x64xbf16>
    %116 = vector.shape_cast %113 : vector<8x64xbf16> to vector<1x8x64xbf16>
    tpu.vector_store %arg14[%c0_46, %c0_47, %c0_48], %116 {strides = array<i32>} : memref<1x8x64xbf16, #tpu.memory_space<vmem>>, vector<1x8x64xbf16>,
    %117 = tpu.concatenate %84, %84 in 1 : vector<8x16xf32>, vector<8x16xf32> -> vector<8x32xf32>
    %118 = tpu.concatenate %85, %85 in 1 : vector<8x16xf32>, vector<8x16xf32> -> vector<8x32xf32>
    %119 = tpu.iota {dimensions = array<i32: 1>} : vector<8x32xi32>
    %c2_i32_49 = arith.constant 2 : i32
    %c0_i32_50 = arith.constant 0 : i32
    %120 = arith.cmpi eq, %c2_i32_49, %c0_i32_50 : i32
    %c1_i32_51 = arith.constant 1 : i32
    %121 = arith.select %120, %c1_i32_51, %c2_i32_49 : i32
    %122 = vector.broadcast %121 : i32 to vector<8x32xi32>
    %123 = arith.remsi %119, %122 : vector<8x32xi32>
    %c0_i32_52 = arith.constant 0 : i32
    %124 = vector.broadcast %c0_i32_52 : i32 to vector<8x32xi32>
    %125 = arith.cmpi ne, %123, %124 : vector<8x32xi32>
    %c0_i32_53 = arith.constant 0 : i32
    %126 = vector.broadcast %c0_i32_53 : i32 to vector<8x32xi32>
    %127 = arith.cmpi slt, %123, %126 : vector<8x32xi32>
    %c0_i32_54 = arith.constant 0 : i32
    %128 = arith.cmpi slt, %121, %c0_i32_54 : i32
    %129 = vector.broadcast %128 : i1 to vector<8x32xi1>
    %130 = vector.broadcast %129 : vector<8x32xi1> to vector<8x32xi1>
    %131 = arith.xori %127, %130 : vector<8x32xi1>
    %132 = arith.andi %131, %125 : vector<8x32xi1>
    %133 = vector.broadcast %121 : i32 to vector<8x32xi32>
    %134 = arith.addi %123, %133 : vector<8x32xi32>
    %135 = arith.select %132, %134, %123 : vector<8x32xi1>, vector<8x32xi32>
    %c0_i32_55 = arith.constant 0 : i32
    %136 = vector.broadcast %c0_i32_55 : i32 to vector<8x32xi32>
    %137 = arith.cmpi eq, %135, %136 : vector<8x32xi32>
    %c31_i32 = arith.constant 31 : i32
    %138 = tpu.dynamic_rotate %83 by %c31_i32 dim 1 : vector<8x32xf32>, i32 -> vector<8x32xf32>
    %c1_i32_56 = arith.constant 1 : i32
    %139 = tpu.dynamic_rotate %83 by %c1_i32_56 dim 1 : vector<8x32xf32>, i32 -> vector<8x32xf32>
    %140 = arith.select %137, %138, %139 : vector<8x32xi1>, vector<8x32xf32>
    %141 = arith.mulf %83, %117 : vector<8x32xf32>
    %142 = arith.mulf %140, %118 : vector<8x32xf32>
    %143 = arith.addf %141, %142 : vector<8x32xf32>
    %144 = arith.truncf %143 : vector<8x32xf32> to vector<8x32xbf16>
    %c0_57 = arith.constant 0 : index
    %c0_58 = arith.constant 0 : index
    %c0_59 = arith.constant 0 : index
    %145 = vector.load %arg15[%c0_57, %c0_58, %c0_59] : memref<1x8x32xbf16, #tpu.memory_space<vmem>>, vector<1x8x32xbf16>
    %146 = vector.shape_cast %145 : vector<1x8x32xbf16> to vector<8x32xbf16>
    %147 = vector.shape_cast %144 : vector<8x32xbf16> to vector<1x8x32xbf16>
    tpu.vector_store %arg15[%c0_57, %c0_58, %c0_59], %147 {strides = array<i32>} : memref<1x8x32xbf16, #tpu.memory_space<vmem>>, vector<1x8x32xbf16>,
    %148 = arith.truncf %31 : vector<8x32xf32> to vector<8x32xbf16>
    %c0_60 = arith.constant 0 : index
    %c0_61 = arith.constant 0 : index
    %c0_62 = arith.constant 0 : index
    %149 = vector.load %arg16[%c0_60, %c0_61, %c0_62] : memref<1x8x32xbf16, #tpu.memory_space<vmem>>, vector<1x8x32xbf16>
    %150 = vector.shape_cast %149 : vector<1x8x32xbf16> to vector<8x32xbf16>
    %151 = vector.shape_cast %148 : vector<8x32xbf16> to vector<1x8x32xbf16>
    tpu.vector_store %arg16[%c0_60, %c0_61, %c0_62], %151 {strides = array<i32>} : memref<1x8x32xbf16, #tpu.memory_space<vmem>>, vector<1x8x32xbf16>,
    return
  }
  func.func @transform_0(%arg0: i32, %arg1: i32) -> (i32, i32, i32) {
    %c0_i32 = arith.constant 0 : i32
    %c0_i32_0 = arith.constant 0 : i32
    return %arg0, %arg1, %c0_i32 : i32, i32, i32
  }
  func.func @transform_1(%arg0: i32, %arg1: i32) -> (i32, i32, i32) {
    %c0_i32 = arith.constant 0 : i32
    %c0_i32_0 = arith.constant 0 : i32
    %c0_i32_1 = arith.constant 0 : i32
    return %arg0, %c0_i32, %c0_i32_0 : i32, i32, i32
  }
  func.func @transform_2(%arg0: i32, %arg1: i32) -> (i32, i32) {
    %c0_i32 = arith.constant 0 : i32
    %c0_i32_0 = arith.constant 0 : i32
    return %arg1, %c0_i32 : i32, i32
  }
  func.func @transform_3(%arg0: i32, %arg1: i32) -> (i32, i32) {
    %c0_i32 = arith.constant 0 : i32
    %c0_i32_0 = arith.constant 0 : i32
    return %arg1, %c0_i32 : i32, i32
  }
  func.func @transform_4(%arg0: i32, %arg1: i32) -> (i32, i32) {
    %c0_i32 = arith.constant 0 : i32
    %c0_i32_0 = arith.constant 0 : i32
    %c0_i32_1 = arith.constant 0 : i32
    return %c0_i32, %c0_i32_0 : i32, i32
  }
  func.func @transform_5(%arg0: i32, %arg1: i32) -> (i32, i32) {
    %c0_i32 = arith.constant 0 : i32
    %c0_i32_0 = arith.constant 0 : i32
    %c0_i32_1 = arith.constant 0 : i32
    return %c0_i32, %c0_i32_0 : i32, i32
  }
  func.func @transform_6(%arg0: i32, %arg1: i32) -> (i32, i32) {
    %c0_i32 = arith.constant 0 : i32
    %c0_i32_0 = arith.constant 0 : i32
    %c0_i32_1 = arith.constant 0 : i32
    return %c0_i32, %c0_i32_0 : i32, i32
  }
  func.func @transform_7(%arg0: i32, %arg1: i32) -> (i32, i32) {
    %c0_i32 = arith.constant 0 : i32
    %c0_i32_0 = arith.constant 0 : i32
    %c0_i32_1 = arith.constant 0 : i32
    return %c0_i32, %c0_i32_0 : i32, i32
  }
  func.func @transform_8(%arg0: i32, %arg1: i32) -> (i32, i32) {
    %c0_i32 = arith.constant 0 : i32
    %c0_i32_0 = arith.constant 0 : i32
    %c0_i32_1 = arith.constant 0 : i32
    return %c0_i32, %c0_i32_0 : i32, i32
  }
  func.func @transform_9(%arg0: i32, %arg1: i32) -> (i32, i32) {
    %c0_i32 = arith.constant 0 : i32
    %c0_i32_0 = arith.constant 0 : i32
    %c0_i32_1 = arith.constant 0 : i32
    return %c0_i32, %c0_i32_0 : i32, i32
  }
  func.func @transform_10(%arg0: i32, %arg1: i32) -> (i32, i32) {
    %c0_i32 = arith.constant 0 : i32
    %c0_i32_0 = arith.constant 0 : i32
    %c0_i32_1 = arith.constant 0 : i32
    return %c0_i32, %c0_i32_0 : i32, i32
  }
  func.func @transform_11(%arg0: i32, %arg1: i32) -> (i32, i32) {
    %c0_i32 = arith.constant 0 : i32
    %c0_i32_0 = arith.constant 0 : i32
    %c0_i32_1 = arith.constant 0 : i32
    return %c0_i32, %c0_i32_0 : i32, i32
  }
  func.func @transform_12(%arg0: i32, %arg1: i32) -> (i32, i32, i32) {
    %c0_i32 = arith.constant 0 : i32
    %c0_i32_0 = arith.constant 0 : i32
    return %arg0, %arg1, %c0_i32 : i32, i32, i32
  }
  func.func @transform_13(%arg0: i32, %arg1: i32) -> (i32, i32, i32) {
    %c0_i32 = arith.constant 0 : i32
    %c0_i32_0 = arith.constant 0 : i32
    return %arg0, %arg1, %c0_i32 : i32, i32, i32
  }
  func.func @transform_14(%arg0: i32, %arg1: i32) -> (i32, i32, i32) {
    %c0_i32 = arith.constant 0 : i32
    %c0_i32_0 = arith.constant 0 : i32
    return %arg0, %arg1, %c0_i32 : i32, i32, i32
  }
}

</mosaic_0001>

<llo_original>
// kernel: tpu_custom_call.1
$region0: #{tpu_custom_call.1}
  #allocation0 [shape = 'u32[]', space=smem, size = 0x4, offset = 0x4, fixed_abs, tag = 'smem constant byte address 0x4 - core index']
  #allocation1 [shape = 'u32[72,128]{1,0:T(1,128)}', space=vmem, size = 0x9000, scoped, tag = 'internal scratch']
  %s0 = inlined_call_operand.vmem [shape: f32[2,8,64], index: 0, kind: input, shape index: {}]
  %s1 = inlined_call_operand.vmem [shape: f32[2,3,64], index: 1, kind: input, shape index: {}]
  %s2 = inlined_call_operand.vmem [shape: f32[8,16], index: 2, kind: input, shape index: {}]
  %s3 = inlined_call_operand.vmem [shape: f32[8,16], index: 3, kind: input, shape index: {}]
  %s4 = inlined_call_operand.vmem [shape: f32[1,64], index: 4, kind: input, shape index: {}]
  %s5 = inlined_call_operand.vmem [shape: bf16[64,64], index: 5, kind: input, shape index: {}]
  %s6 = inlined_call_operand.vmem [shape: bf16[64,32], index: 6, kind: input, shape index: {}]
  %s7 = inlined_call_operand.vmem [shape: bf16[64,32], index: 7, kind: input, shape index: {}]
  %s8 = inlined_call_operand.vmem [shape: f32[1,64], index: 8, kind: input, shape index: {}]
  %s9 = inlined_call_operand.vmem [shape: f32[1,64], index: 9, kind: input, shape index: {}]
  %s10 = inlined_call_operand.vmem [shape: f32[1,32], index: 10, kind: input, shape index: {}]
  %s11 = inlined_call_operand.vmem [shape: f32[1,32], index: 11, kind: input, shape index: {}]
  %s12 = inlined_call_operand.hbm [shape: bf16[2,8,64], index: 12, kind: output, shape index: {0}]
  %s13 = inlined_call_operand.hbm [shape: bf16[2,8,32], index: 13, kind: output, shape index: {1}]
  %s14 = inlined_call_operand.hbm [shape: bf16[2,8,32], index: 14, kind: output, shape index: {2}]
  %15 = xla_tuple %s12, %s13, %s14
  %s16 = sld [smem:[#allocation0]]
  $region97: #{tpu_custom_call.1} parent=0
    _
  %s18 = ssub.s32 1, %s16
  %s19 = scalar_select 0, %s18, %s16
  $region1: #{tpu_custom_call.1} parent=0
    #allocation2 [shape = 'u8[4096]{0}', space=vmem, size = 0x1000, scoped, tag = 'output window, operand 0']
    #allocation3 [shape = 's32[2]{0}', space=sflag, size = 0x8, scoped, tag = 'scoped memory for tpu_custom_call.1']
    #allocation4 [shape = 'u8[4096]{0}', space=vmem, size = 0x1000, scoped, tag = 'output window, operand 1']
    #allocation5 [shape = 's32[2]{0}', space=sflag, size = 0x8, scoped, tag = 'scoped memory for tpu_custom_call.1']
    #allocation6 [shape = 'u8[4096]{0}', space=vmem, size = 0x1000, scoped, tag = 'output window, operand 2']
    %20 = vsyncpa [#allocation3], 0
    %s21 = scalar_lea.sflag [#allocation3], 1
    %22 = vsyncpa %s21, 0
    %23 = vsyncpa [#allocation5], 0
    %s24 = scalar_lea.sflag [#allocation5], 1
    %25 = vsyncpa %s24, 0
    loop: start=0, step=1, limit=4
    $region2: #{tpu_custom_call.1} parent=1 // loop_pre_header
      _
    $region3: #{tpu_custom_call.1} parent=1 // loop_header
      %s27 = sphi 0, %s31
      %p28 = scmp.ge.s32.totalorder %s27, 4
      %s34 = sphi 0, %s46
      %s35 = sphi 0, %s42
      %s36 = sphi 0, %s34
      %s37 = sphi 0, %s35
      %s38 = sphi 0, %s36
      %s39 = sphi 0, %s37
      %s51 = sphi 0, %s53
      %s54 = sphi 0, %s51
      %s55 = sphi 0, %s54
      %s71 = sphi 0, %s55
      %s77 = sphi 0, %s79
      %s80 = sphi 0, %s77
      %s81 = sphi 0, %s80
      %s97 = sphi 0, %s81
      %s103 = sphi 0, %s105
      %s106 = sphi 0, %s103
      %s107 = sphi 0, %s106
      %s123 = sphi 0, %s107
      %s129 = sphi 0, %s131
      %s132 = sphi 0, %s129
      %s133 = sphi 0, %s132
      %s149 = sphi 0, %s133
      %s153 = sphi 0, %s153
      %s155 = sphi 0, %s153
      %s156 = sphi 0, %s155
      %s170 = sphi 0, %s156
      %s174 = sphi 0, %s174
      %s176 = sphi 0, %s174
      %s177 = sphi 0, %s176
      %s191 = sphi 0, %s177
      %s195 = sphi 0, %s195
      %s197 = sphi 0, %s195
      %s198 = sphi 0, %s197
      %s212 = sphi 0, %s198
      %s216 = sphi 0, %s216
      %s218 = sphi 0, %s216
      %s219 = sphi 0, %s218
      %s233 = sphi 0, %s219
      %s237 = sphi 0, %s237
      %s239 = sphi 0, %s237
      %s240 = sphi 0, %s239
      %s254 = sphi 0, %s240
      %s258 = sphi 0, %s258
      %s260 = sphi 0, %s258
      %s261 = sphi 0, %s260
      %s275 = sphi 0, %s261
      %s279 = sphi 0, %s279
      %s281 = sphi 0, %s279
      %s282 = sphi 0, %s281
      %s296 = sphi 0, %s282
      %s300 = sphi 0, %s300
      %s302 = sphi 0, %s300
      %s303 = sphi 0, %s302
      %s317 = sphi 0, %s303
      %s325 = sphi 0, %s327
      %s328 = sphi 0, %s325
      %s329 = sphi 0, %s328
      %s345 = sphi 0, %s329
      %s353 = sphi 0, %s355
      %s356 = sphi 0, %s353
      %s357 = sphi 0, %s356
      %s373 = sphi 0, %s357
      %s381 = sphi 0, %s383
      %s384 = sphi 0, %s381
      %s385 = sphi 0, %s384
      %s401 = sphi 0, %s385
    $region4: #{tpu_custom_call.1} parent=1 // loop_header_branch
      %30 = sbr.rel (%p28) target = $region8
    $region5: #{tpu_custom_call.1} parent=1 // loop_body
      %s32 = ssub.s32 %s27, 1
      %s33 = ssub.s32 %s27, 2
      %s40 = sadd.s32 1, %s35
      %p41 = scmp.ge.s32.totalorder %s40, 1
      %s42 = scalar_select %p41, 0, %s40
      %s43 = sadd.s32 1, %s34
      %s44 = scalar_select %p41, %s43, %s34
      %p45 = scmp.ge.s32.totalorder %s44, 2
      %s46 = scalar_select %p45, 0, %s44
      %s47 = ssub.s32 %s34, %s46
      %s48 = ssub.s32 %s35, %s42
      %s49 = sor.u32 %s47, %s48
      %p50 = scmp.eq.s32.totalorder %s49, 0
      %s52 = sadd.s32 %s51, 1
      %s53 = scalar_select %p50, %s51, %s52
      %p56 = pneg %p50
      %p57 = scmp.eq.s32.totalorder %s27, 1
      %p58 = por %p56, %p57
      %p59 = scmp.ne.s32.totalorder %s51, %s54
      %p60 = scmp.eq.s32.totalorder %s27, 0
      %p61 = por %p59, %p60
      %p62 = scmp.ne.s32.totalorder %s51, %s54
      %p63 = scmp.eq.s32.totalorder %s32, 1
      %p64 = por %p62, %p63
      %p65 = scmp.ne.s32.totalorder %s54, %s55
      %p66 = scmp.eq.s32.totalorder %s32, 0
      %p67 = por %p65, %p66
      %p68 = scmp.ne.s32.totalorder %s54, %s55
      %p69 = scmp.eq.s32.totalorder %s33, 1
      %p70 = por %p68, %p69
      %p72 = scmp.ne.s32.totalorder %s55, %s71
      %p73 = scmp.eq.s32.totalorder %s33, 0
      %p74 = por %p72, %p73
      %s75 = ssub.s32 %s34, %s46
      %p76 = scmp.eq.s32.totalorder %s75, 0
      %s78 = sadd.s32 %s77, 1
      %s79 = scalar_select %p76, %s77, %s78
      %p82 = pneg %p76
      %p83 = scmp.eq.s32.totalorder %s27, 1
      %p84 = por %p82, %p83
      %p85 = scmp.ne.s32.totalorder %s77, %s80
      %p86 = scmp.eq.s32.totalorder %s27, 0
      %p87 = por %p85, %p86
      %p88 = scmp.ne.s32.totalorder %s77, %s80
      %p89 = scmp.eq.s32.totalorder %s32, 1
      %p90 = por %p88, %p89
      %p91 = scmp.ne.s32.totalorder %s80, %s81
      %p92 = scmp.eq.s32.totalorder %s32, 0
      %p93 = por %p91, %p92
      %p94 = scmp.ne.s32.totalorder %s80, %s81
      %p95 = scmp.eq.s32.totalorder %s33, 1
      %p96 = por %p94, %p95
      %p98 = scmp.ne.s32.totalorder %s81, %s97
      %p99 = scmp.eq.s32.totalorder %s33, 0
      %p100 = por %p98, %p99
      %s101 = ssub.s32 %s35, %s42
      %p102 = scmp.eq.s32.totalorder %s101, 0
      %s104 = sadd.s32 %s103, 1
      %s105 = scalar_select %p102, %s103, %s104
      %p108 = pneg %p102
      %p109 = scmp.eq.s32.totalorder %s27, 1
      %p110 = por %p108, %p109
      %p111 = scmp.ne.s32.totalorder %s103, %s106
      %p112 = scmp.eq.s32.totalorder %s27, 0
      %p113 = por %p111, %p112
      %p114 = scmp.ne.s32.totalorder %s103, %s106
      %p115 = scmp.eq.s32.totalorder %s32, 1
      %p116 = por %p114, %p115
      %p117 = scmp.ne.s32.totalorder %s106, %s107
      %p118 = scmp.eq.s32.totalorder %s32, 0
      %p119 = por %p117, %p118
      %p120 = scmp.ne.s32.totalorder %s106, %s107
      %p121 = scmp.eq.s32.totalorder %s33, 1
      %p122 = por %p120, %p121
      %p124 = scmp.ne.s32.totalorder %s107, %s123
      %p125 = scmp.eq.s32.totalorder %s33, 0
      %p126 = por %p124, %p125
      %s127 = ssub.s32 %s35, %s42
      %p128 = scmp.eq.s32.totalorder %s127, 0
      %s130 = sadd.s32 %s129, 1
      %s131 = scalar_select %p128, %s129, %s130
      %p134 = pneg %p128
      %p135 = scmp.eq.s32.totalorder %s27, 1
      %p136 = por %p134, %p135
      %p137 = scmp.ne.s32.totalorder %s129, %s132
      %p138 = scmp.eq.s32.totalorder %s27, 0
      %p139 = por %p137, %p138
      %p140 = scmp.ne.s32.totalorder %s129, %s132
      %p141 = scmp.eq.s32.totalorder %s32, 1
      %p142 = por %p140, %p141
      %p143 = scmp.ne.s32.totalorder %s132, %s133
      %p144 = scmp.eq.s32.totalorder %s32, 0
      %p145 = por %p143, %p144
      %p146 = scmp.ne.s32.totalorder %s132, %s133
      %p147 = scmp.eq.s32.totalorder %s33, 1
      %p148 = por %p146, %p147
      %p150 = scmp.ne.s32.totalorder %s133, %s149
      %p151 = scmp.eq.s32.totalorder %s33, 0
      %p152 = por %p150, %p151
      %s154 = sadd.s32 %s153, 1
      %p157 = scmp.eq.s32.totalorder %s27, 1
      %p158 = scmp.ne.s32.totalorder %s153, %s155
      %p159 = scmp.eq.s32.totalorder %s27, 0
      %p160 = por %p158, %p159
      %p161 = scmp.ne.s32.totalorder %s153, %s155
      %p162 = scmp.eq.s32.totalorder %s32, 1
      %p163 = por %p161, %p162
      %p164 = scmp.ne.s32.totalorder %s155, %s156
      %p165 = scmp.eq.s32.totalorder %s32, 0
      %p166 = por %p164, %p165
      %p167 = scmp.ne.s32.totalorder %s155, %s156
      %p168 = scmp.eq.s32.totalorder %s33, 1
      %p169 = por %p167, %p168
      %p171 = scmp.ne.s32.totalorder %s156, %s170
      %p172 = scmp.eq.s32.totalorder %s33, 0
      %p173 = por %p171, %p172
      %s175 = sadd.s32 %s174, 1
      %p178 = scmp.eq.s32.totalorder %s27, 1
      %p179 = scmp.ne.s32.totalorder %s174, %s176
      %p180 = scmp.eq.s32.totalorder %s27, 0
      %p181 = por %p179, %p180
      %p182 = scmp.ne.s32.totalorder %s174, %s176
      %p183 = scmp.eq.s32.totalorder %s32, 1
      %p184 = por %p182, %p183
      %p185 = scmp.ne.s32.totalorder %s176, %s177
      %p186 = scmp.eq.s32.totalorder %s32, 0
      %p187 = por %p185, %p186
      %p188 = scmp.ne.s32.totalorder %s176, %s177
      %p189 = scmp.eq.s32.totalorder %s33, 1
      %p190 = por %p188, %p189
      %p192 = scmp.ne.s32.totalorder %s177, %s191
      %p193 = scmp.eq.s32.totalorder %s33, 0
      %p194 = por %p192, %p193
      %s196 = sadd.s32 %s195, 1
      %p199 = scmp.eq.s32.totalorder %s27, 1
      %p200 = scmp.ne.s32.totalorder %s195, %s197
      %p201 = scmp.eq.s32.totalorder %s27, 0
      %p202 = por %p200, %p201
      %p203 = scmp.ne.s32.totalorder %s195, %s197
      %p204 = scmp.eq.s32.totalorder %s32, 1
      %p205 = por %p203, %p204
      %p206 = scmp.ne.s32.totalorder %s197, %s198
      %p207 = scmp.eq.s32.totalorder %s32, 0
      %p208 = por %p206, %p207
      %p209 = scmp.ne.s32.totalorder %s197, %s198
      %p210 = scmp.eq.s32.totalorder %s33, 1
      %p211 = por %p209, %p210
      %p213 = scmp.ne.s32.totalorder %s198, %s212
      %p214 = scmp.eq.s32.totalorder %s33, 0
      %p215 = por %p213, %p214
      %s217 = sadd.s32 %s216, 1
      %p220 = scmp.eq.s32.totalorder %s27, 1
      %p221 = scmp.ne.s32.totalorder %s216, %s218
      %p222 = scmp.eq.s32.totalorder %s27, 0
      %p223 = por %p221, %p222
      %p224 = scmp.ne.s32.totalorder %s216, %s218
      %p225 = scmp.eq.s32.totalorder %s32, 1
      %p226 = por %p224, %p225
      %p227 = scmp.ne.s32.totalorder %s218, %s219
      %p228 = scmp.eq.s32.totalorder %s32, 0
      %p229 = por %p227, %p228
      %p230 = scmp.ne.s32.totalorder %s218, %s219
      %p231 = scmp.eq.s32.totalorder %s33, 1
      %p232 = por %p230, %p231
      %p234 = scmp.ne.s32.totalorder %s219, %s233
      %p235 = scmp.eq.s32.totalorder %s33, 0
      %p236 = por %p234, %p235
      %s238 = sadd.s32 %s237, 1
      %p241 = scmp.eq.s32.totalorder %s27, 1
      %p242 = scmp.ne.s32.totalorder %s237, %s239
      %p243 = scmp.eq.s32.totalorder %s27, 0
      %p244 = por %p242, %p243
      %p245 = scmp.ne.s32.totalorder %s237, %s239
      %p246 = scmp.eq.s32.totalorder %s32, 1
      %p247 = por %p245, %p246
      %p248 = scmp.ne.s32.totalorder %s239, %s240
      %p249 = scmp.eq.s32.totalorder %s32, 0
      %p250 = por %p248, %p249
      %p251 = scmp.ne.s32.totalorder %s239, %s240
      %p252 = scmp.eq.s32.totalorder %s33, 1
      %p253 = por %p251, %p252
      %p255 = scmp.ne.s32.totalorder %s240, %s254
      %p256 = scmp.eq.s32.totalorder %s33, 0
      %p257 = por %p255, %p256
      %s259 = sadd.s32 %s258, 1
      %p262 = scmp.eq.s32.totalorder %s27, 1
      %p263 = scmp.ne.s32.totalorder %s258, %s260
      %p264 = scmp.eq.s32.totalorder %s27, 0
      %p265 = por %p263, %p264
      %p266 = scmp.ne.s32.totalorder %s258, %s260
      %p267 = scmp.eq.s32.totalorder %s32, 1
      %p268 = por %p266, %p267
      %p269 = scmp.ne.s32.totalorder %s260, %s261
      %p270 = scmp.eq.s32.totalorder %s32, 0
      %p271 = por %p269, %p270
      %p272 = scmp.ne.s32.totalorder %s260, %s261
      %p273 = scmp.eq.s32.totalorder %s33, 1
      %p274 = por %p272, %p273
      %p276 = scmp.ne.s32.totalorder %s261, %s275
      %p277 = scmp.eq.s32.totalorder %s33, 0
      %p278 = por %p276, %p277
      %s280 = sadd.s32 %s279, 1
      %p283 = scmp.eq.s32.totalorder %s27, 1
      %p284 = scmp.ne.s32.totalorder %s279, %s281
      %p285 = scmp.eq.s32.totalorder %s27, 0
      %p286 = por %p284, %p285
      %p287 = scmp.ne.s32.totalorder %s279, %s281
      %p288 = scmp.eq.s32.totalorder %s32, 1
      %p289 = por %p287, %p288
      %p290 = scmp.ne.s32.totalorder %s281, %s282
      %p291 = scmp.eq.s32.totalorder %s32, 0
      %p292 = por %p290, %p291
      %p293 = scmp.ne.s32.totalorder %s281, %s282
      %p294 = scmp.eq.s32.totalorder %s33, 1
      %p295 = por %p293, %p294
      %p297 = scmp.ne.s32.totalorder %s282, %s296
      %p298 = scmp.eq.s32.totalorder %s33, 0
      %p299 = por %p297, %p298
      %s301 = sadd.s32 %s300, 1
      %p304 = scmp.eq.s32.totalorder %s27, 1
      %p305 = scmp.ne.s32.totalorder %s300, %s302
      %p306 = scmp.eq.s32.totalorder %s27, 0
      %p307 = por %p305, %p306
      %p308 = scmp.ne.s32.totalorder %s300, %s302
      %p309 = scmp.eq.s32.totalorder %s32, 1
      %p310 = por %p308, %p309
      %p311 = scmp.ne.s32.totalorder %s302, %s303
      %p312 = scmp.eq.s32.totalorder %s32, 0
      %p313 = por %p311, %p312
      %p314 = scmp.ne.s32.totalorder %s302, %s303
      %p315 = scmp.eq.s32.totalorder %s33, 1
      %p316 = por %p314, %p315
      %p318 = scmp.ne.s32.totalorder %s303, %s317
      %p319 = scmp.eq.s32.totalorder %s33, 0
      %p320 = por %p318, %p319
      %s321 = ssub.s32 %s34, %s46
      %s322 = ssub.s32 %s35, %s42
      %s323 = sor.u32 %s321, %s322
      %p324 = scmp.eq.s32.totalorder %s323, 0
      %s326 = sadd.s32 %s325, 1
      %s327 = scalar_select %p324, %s325, %s326
      %p330 = pneg %p324
      %p331 = scmp.eq.s32.totalorder %s27, 1
      %p332 = por %p330, %p331
      %p333 = scmp.ne.s32.totalorder %s325, %s328
      %p334 = scmp.eq.s32.totalorder %s27, 0
      %p335 = por %p333, %p334
      %p336 = scmp.ne.s32.totalorder %s325, %s328
      %p337 = scmp.eq.s32.totalorder %s32, 1
      %p338 = por %p336, %p337
      %p339 = scmp.ne.s32.totalorder %s328, %s329
      %p340 = scmp.eq.s32.totalorder %s32, 0
      %p341 = por %p339, %p340
      %p342 = scmp.ne.s32.totalorder %s328, %s329
      %p343 = scmp.eq.s32.totalorder %s33, 1
      %p344 = por %p342, %p343
      %p346 = scmp.ne.s32.totalorder %s329, %s345
      %p347 = scmp.eq.s32.totalorder %s33, 0
      %p348 = por %p346, %p347
      %s349 = ssub.s32 %s34, %s46
      %s350 = ssub.s32 %s35, %s42
      %s351 = sor.u32 %s349, %s350
      %p352 = scmp.eq.s32.totalorder %s351, 0
      %s354 = sadd.s32 %s353, 1
      %s355 = scalar_select %p352, %s353, %s354
      %p358 = pneg %p352
      %p359 = scmp.eq.s32.totalorder %s27, 1
      %p360 = por %p358, %p359
      %p361 = scmp.ne.s32.totalorder %s353, %s356
      %p362 = scmp.eq.s32.totalorder %s27, 0
      %p363 = por %p361, %p362
      %p364 = scmp.ne.s32.totalorder %s353, %s356
      %p365 = scmp.eq.s32.totalorder %s32, 1
      %p366 = por %p364, %p365
      %p367 = scmp.ne.s32.totalorder %s356, %s357
      %p368 = scmp.eq.s32.totalorder %s32, 0
      %p369 = por %p367, %p368
      %p370 = scmp.ne.s32.totalorder %s356, %s357
      %p371 = scmp.eq.s32.totalorder %s33, 1
      %p372 = por %p370, %p371
      %p374 = scmp.ne.s32.totalorder %s357, %s373
      %p375 = scmp.eq.s32.totalorder %s33, 0
      %p376 = por %p374, %p375
      %s377 = ssub.s32 %s34, %s46
      %s378 = ssub.s32 %s35, %s42
      %s379 = sor.u32 %s377, %s378
      %p380 = scmp.eq.s32.totalorder %s379, 0
      %s382 = sadd.s32 %s381, 1
      %s383 = scalar_select %p380, %s381, %s382
      %p386 = pneg %p380
      %p387 = scmp.eq.s32.totalorder %s27, 1
      %p388 = por %p386, %p387
      %p389 = scmp.ne.s32.totalorder %s381, %s384
      %p390 = scmp.eq.s32.totalorder %s27, 0
      %p391 = por %p389, %p390
      %p392 = scmp.ne.s32.totalorder %s381, %s384
      %p393 = scmp.eq.s32.totalorder %s32, 1
      %p394 = por %p392, %p393
      %p395 = scmp.ne.s32.totalorder %s384, %s385
      %p396 = scmp.eq.s32.totalorder %s32, 0
      %p397 = por %p395, %p396
      %p398 = scmp.ne.s32.totalorder %s384, %s385
      %p399 = scmp.eq.s32.totalorder %s33, 1
      %p400 = por %p398, %p399
      %p402 = scmp.ne.s32.totalorder %s385, %s401
      %p403 = scmp.eq.s32.totalorder %s33, 0
      %p404 = por %p402, %p403
      %p405 = scmp.le.s32.totalorder 1, %s27
      %p406 = scmp.lt.s32.totalorder %s27, 3
      %p407 = pnand %p405, %p406
      %p408 = pneg %p407
      // Predicated region
      $region9: #{tpu_custom_call.1} parent=5 // pred_check
        _
      $region10: #{tpu_custom_call.1} parent=5 // pred_check_branch
        %410 = sbr.rel (%p407) target = $region12
      $region11: #{tpu_custom_call.1} parent=5 // pred_region
        %s411 = ssub.s32 %s27, 1
        // Predicated region
        $region13: #{tpu_custom_call.1} parent=11 // pred_check
          %p412 = pneg %p119
        $region14: #{tpu_custom_call.1} parent=11 // pred_check_branch
          %414 = sbr.rel (%p412) target = $region16
        $region15: #{tpu_custom_call.1} parent=11 // pred_region
          %p415 = scmp.lt.s32.totalorder %s37, 0
          %s416 = scalar_select %p415, %s37, 0
          %s417 = smul.addr %s416, 8
          %s418 = scalar_lea.vmem %s2, %s417
        $region16: #{tpu_custom_call.1} parent=11 // pred_fallthru
          _
        // Predicated region
        $region17: #{tpu_custom_call.1} parent=11 // pred_check
          %p419 = pneg %p145
        $region18: #{tpu_custom_call.1} parent=11 // pred_check_branch
          %421 = sbr.rel (%p419) target = $region20
        $region19: #{tpu_custom_call.1} parent=11 // pred_region
          %p422 = scmp.lt.s32.totalorder %s37, 0
          %s423 = scalar_select %p422, %s37, 0
          %s424 = smul.addr %s423, 8
          %s425 = scalar_lea.vmem %s3, %s424
        $region20: #{tpu_custom_call.1} parent=11 // pred_fallthru
          _
        // Predicated region
        $region21: #{tpu_custom_call.1} parent=11 // pred_check
          %p426 = pneg %p166
        $region22: #{tpu_custom_call.1} parent=11 // pred_check_branch
          %428 = sbr.rel (%p426) target = $region24
        $region23: #{tpu_custom_call.1} parent=11 // pred_region
          _
        $region24: #{tpu_custom_call.1} parent=11 // pred_fallthru
          _
        // Predicated region
        $region25: #{tpu_custom_call.1} parent=11 // pred_check
          %p429 = pneg %p187
        $region26: #{tpu_custom_call.1} parent=11 // pred_check_branch
          %431 = sbr.rel (%p429) target = $region28
        $region27: #{tpu_custom_call.1} parent=11 // pred_region
          _
        $region28: #{tpu_custom_call.1} parent=11 // pred_fallthru
          _
        // Predicated region
        $region29: #{tpu_custom_call.1} parent=11 // pred_check
          %p432 = pneg %p208
        $region30: #{tpu_custom_call.1} parent=11 // pred_check_branch
          %434 = sbr.rel (%p432) target = $region32
        $region31: #{tpu_custom_call.1} parent=11 // pred_region
          _
        $region32: #{tpu_custom_call.1} parent=11 // pred_fallthru
          _
        // Predicated region
        $region33: #{tpu_custom_call.1} parent=11 // pred_check
          %p435 = pneg %p229
        $region34: #{tpu_custom_call.1} parent=11 // pred_check_branch
          %437 = sbr.rel (%p435) target = $region36
        $region35: #{tpu_custom_call.1} parent=11 // pred_region
          _
        $region36: #{tpu_custom_call.1} parent=11 // pred_fallthru
          _
        // Predicated region
        $region37: #{tpu_custom_call.1} parent=11 // pred_check
          %p438 = pneg %p250
        $region38: #{tpu_custom_call.1} parent=11 // pred_check_branch
          %440 = sbr.rel (%p438) target = $region40
        $region39: #{tpu_custom_call.1} parent=11 // pred_region
          _
        $region40: #{tpu_custom_call.1} parent=11 // pred_fallthru
          _
        // Predicated region
        $region41: #{tpu_custom_call.1} parent=11 // pred_check
          %p441 = pneg %p271
        $region42: #{tpu_custom_call.1} parent=11 // pred_check_branch
          %443 = sbr.rel (%p441) target = $region44
        $region43: #{tpu_custom_call.1} parent=11 // pred_region
          _
        $region44: #{tpu_custom_call.1} parent=11 // pred_fallthru
          _
        // Predicated region
        $region45: #{tpu_custom_call.1} parent=11 // pred_check
          %p444 = pneg %p292
        $region46: #{tpu_custom_call.1} parent=11 // pred_check_branch
          %446 = sbr.rel (%p444) target = $region48
        $region47: #{tpu_custom_call.1} parent=11 // pred_region
          _
        $region48: #{tpu_custom_call.1} parent=11 // pred_fallthru
          _
        // Predicated region
        $region49: #{tpu_custom_call.1} parent=11 // pred_check
          %p447 = pneg %p313
        $region50: #{tpu_custom_call.1} parent=11 // pred_check_branch
          %449 = sbr.rel (%p447) target = $region52
        $region51: #{tpu_custom_call.1} parent=11 // pred_region
          _
        $region52: #{tpu_custom_call.1} parent=11 // pred_fallthru
          _
      $region12: #{tpu_custom_call.1} parent=5 // pred_fallthru
        _
      %p450 = scmp.lt.s32.totalorder %s27, 2
      // Predicated region
      $region53: #{tpu_custom_call.1} parent=5 // pred_check
        %p451 = pneg %p450
      $region54: #{tpu_custom_call.1} parent=5 // pred_check_branch
        %453 = sbr.rel (%p451) target = $region56
      $region55: #{tpu_custom_call.1} parent=5 // pred_region
        // Predicated region
        $region57: #{tpu_custom_call.1} parent=55 // pred_check
          %p454 = pneg %p61
        $region58: #{tpu_custom_call.1} parent=55 // pred_check_branch
          %456 = sbr.rel (%p454) target = $region60
        $region59: #{tpu_custom_call.1} parent=55 // pred_region
          %p457 = scmp.lt.s32.totalorder %s34, 1
          %s458 = scalar_select %p457, %s34, 1
          %p459 = scmp.lt.s32.totalorder %s35, 0
          %s460 = scalar_select %p459, %s35, 0
          %s461 = sadd.s32 %s460, %s458
          %s462 = smul.addr %s461, 8
          %s463 = scalar_lea.vmem %s0, %s462
        $region60: #{tpu_custom_call.1} parent=55 // pred_fallthru
          _
        // Predicated region
        $region61: #{tpu_custom_call.1} parent=55 // pred_check
          %p464 = pneg %p87
        $region62: #{tpu_custom_call.1} parent=55 // pred_check_branch
          %466 = sbr.rel (%p464) target = $region64
        $region63: #{tpu_custom_call.1} parent=55 // pred_region
          %p467 = scmp.lt.s32.totalorder %s34, 1
          %s468 = scalar_select %p467, %s34, 1
          %s469 = smul.addr %s468, 4
          %s470 = scalar_lea.vmem %s1, %s469
        $region64: #{tpu_custom_call.1} parent=55 // pred_fallthru
          _
      $region56: #{tpu_custom_call.1} parent=5 // pred_fallthru
        _
      %p471 = scmp.le.s32.totalorder 1, %s27
      %p472 = scmp.lt.s32.totalorder %s27, 3
      %p473 = pnand %p471, %p472
      %p474 = pneg %p473
      // Predicated region
      $region65: #{tpu_custom_call.1} parent=5 // pred_check
        _
      $region66: #{tpu_custom_call.1} parent=5 // pred_check_branch
        %476 = sbr.rel (%p473) target = $region68
      $region67: #{tpu_custom_call.1} parent=5 // pred_region
        %s477 = ssub.s32 %s27, 1
        %p478 = scmp.lt.s32.totalorder %s36, 1
        %s479 = scalar_select %p478, %s36, 1
        %p480 = scmp.lt.s32.totalorder %s37, 0
        %s481 = scalar_select %p480, %s37, 0
        %s482 = sadd.s32 %s481, %s479
        %s483 = smul.addr %s482, 8
        %s484 = scalar_lea.vmem %s0, %s483
        %p485 = pneg %p67
        %p486 = pneg %p64
        %p487 = scmp.lt.s32.totalorder %s36, 1
        %s488 = scalar_select %p487, %s36, 1
        %s489 = smul.addr %s488, 4
        %s490 = scalar_lea.vmem %s1, %s489
        %p491 = pneg %p93
        %p492 = pneg %p90
        %p493 = scmp.lt.s32.totalorder %s37, 0
        %s494 = scalar_select %p493, %s37, 0
        %s495 = smul.addr %s494, 8
        %s496 = scalar_lea.vmem %s2, %s495
        %p497 = pneg %p119
        %p498 = pneg %p116
        %p499 = scmp.lt.s32.totalorder %s37, 0
        %s500 = scalar_select %p499, %s37, 0
        %s501 = smul.addr %s500, 8
        %s502 = scalar_lea.vmem %s3, %s501
        %p503 = pneg %p145
        %p504 = pneg %p142
        %p505 = pneg %p166
        %p506 = pneg %p163
        %p507 = pneg %p187
        %p508 = pneg %p184
        %p509 = pneg %p208
        %p510 = pneg %p205
        %p511 = pneg %p229
        %p512 = pneg %p226
        %p513 = pneg %p250
        %p514 = pneg %p247
        %p515 = pneg %p271
        %p516 = pneg %p268
        %p517 = pneg %p292
        %p518 = pneg %p289
        %p519 = pneg %p313
        %p520 = pneg %p310
        %p521 = pneg %p341
        %p522 = pneg %p338
        %s523 = sand.u32 %s328, 1
        %s524 = scalar_lea.sflag [#allocation3], %s523
        %s525 = sand.u32 %s328, 1
        %s526 = smul.addr %s525, 4
        %s527 = scalar_lea.vmem [#allocation2], %s526
        %p528 = pneg %p369
        %p529 = pneg %p366
        %s530 = sand.u32 %s32, 1
        %s531 = scalar_lea.sflag [#allocation5], %s530
        %s532 = sand.u32 %s356, 1
        %s533 = smul.addr %s532, 4
        %s534 = scalar_lea.vmem [#allocation4], %s533
        %p535 = pneg %p397
        %p536 = pneg %p394
        %s537 = sand.u32 %s32, 1
        %s538 = scalar_lea.sflag [#allocation5], %s537
        %s539 = sand.u32 %s384, 1
        %s540 = smul.addr %s539, 4
        %s541 = scalar_lea.vmem [#allocation6], %s540
        %p542 = scmp.lt.s32.totalorder %s36, 1
        %s543 = scalar_select %p542, %s36, 1
        %p544 = scmp.lt.s32.totalorder %s37, 0
        %s545 = scalar_select %p544, %s37, 0
        %s546 = sadd.s32 %s545, %s543
        %s547 = smul.addr %s546, 8
        %s548 = scalar_lea.vmem %s0, %s547
        %p549 = scmp.lt.s32.totalorder %s36, 1
        %s550 = scalar_select %p549, %s36, 1
        %s551 = smul.addr %s550, 4
        %s552 = scalar_lea.vmem %s1, %s551
        %p553 = scmp.lt.s32.totalorder %s37, 0
        %s554 = scalar_select %p553, %s37, 0
        %s555 = smul.addr %s554, 8
        %s556 = scalar_lea.vmem %s2, %s555
        %p557 = scmp.lt.s32.totalorder %s37, 0
        %s558 = scalar_select %p557, %s37, 0
        %s559 = smul.addr %s558, 8
        %s560 = scalar_lea.vmem %s3, %s559
        %v562 = vld [vmem:[%s548] sm:$0xff]
        %v563 = vld [vmem:[%s552] sm:$0x7]
        %v564 = vmul.f32 %v562, %v562
        %vm565 = vcmask 523264
        %v566 = vsel %vm565, %v564, 0.0
        %567 = vadd.xlane.f32.xlu0 %v566
        %v568 = vpop.xlane.xlu0 %567
        %v569 = vrcp.pop 64.0
        %v570 = vmul.f32 64.0, %v569
        %v571 = vsub.f32 1.0, %v570
        %v572 = vmul.f32 %v569, %v571
        %v573 = vadd.f32 %v569, %v572
        %vm574 = vweird.f32 %v569
        %v575 = vsel %vm574, %v569, %v573
        %v576 = vmul.f32 %v568, %v575
        %v577 = vadd.f32 %v576, 1e-05
        %v578 = vrsqrt.pop %v577
        %v579 = vmul.f32 %v578, %v577
        %v580 = vmul.f32 %v579, %v578
        %v581 = vmul.f32 0.5, %v580
        %v582 = vsub.f32 1.5, %v581
        %v583 = vmul.f32 %v578, %v582
        %vm584 = vweird.f32 %v577
        %vm585 = vweird.f32 %v578
        %vm586 = vmor %vm584, %vm585
        %v587 = vsel %vm586, %v578, %v583
        %v588 = vmul.f32 %v562, %v587
        %v589 = vld [vmem:[%s4] sm:$0x1]
        %v591 = vperm.slane %v589, 0
        %v593 = vmul.f32 %v588, %v591
        %v594 = vadd.f32 %v563, 1.0
        %v595 = vperm.slane %v594, 1
        %v596 = vmul.f32 %v593, %v595
        %v597 = vperm.slane %v563, 0
        %v598 = vadd.f32 %v596, %v597
        %v599 = vpack.c.bf16 %v598, %v598
        %v600 = vld [vmem:[%s5] sm:$0xf]
        %v601 = vld [vmem:[%s5 + $0x4] sm:$0xf]
        %v602 = vld [vmem:[%s5 + $0x8] sm:$0xf]
        %v603 = vld [vmem:[%s5 + $0xc] sm:$0xf]
        %v604 = vld [vmem:[%s5 + $0x10] sm:$0xf]
        %v605 = vld [vmem:[%s5 + $0x14] sm:$0xf]
        %v606 = vld [vmem:[%s5 + $0x18] sm:$0xf]
        %v607 = vld [vmem:[%s5 + $0x1c] sm:$0xf]
        %v616 = vunpack.c.l.b16 %v600
        %v617 = vunpack.c.l.b16 %v601
        %v618 = vunpack.c.l.b16 %v602
        %v619 = vunpack.c.l.b16 %v603
        %v620 = vunpack.c.l.b16 %v604
        %v621 = vunpack.c.l.b16 %v605
        %v622 = vunpack.c.l.b16 %v606
        %v623 = vunpack.c.l.b16 %v607
        %v624 = vpack.c.b16 %v617, %v616
        %v625 = vpack.c.b16 %v619, %v618
        %v626 = vpack.c.b16 %v621, %v620
        %v627 = vpack.c.b16 %v623, %v622
        %v633 = vsel %vm565, %v599, 0
        %635 = vmatpush.bf16.msra.mxu0 0
        %636 = vmatpush.bf16.msra.mxu0 0
        %637 = vmatpush.bf16.msra.mxu0 0
        %638 = vmatpush.bf16.msra.mxu0 0
        %639 = vmatpush.bf16.msra.mxu0 %v627
        %640 = vmatpush.bf16.msra.mxu0 %v626
        %641 = vmatpush.bf16.msra.mxu0 %v625
        %642 = vmatpush.bf16.msra.mxu0 %v624
        %643 = vmatmul.bf16.gmra.mxu0 %v633
        %v644 = vpop.f32.mrf.mxu0
        %v645 = vadd.f32 0.0, %v644
        %v646 = vpop.f32.mrf.mxu0
        %647 = vdwg.mxu0
        %v648 = vld [vmem:[%s6] sm:$0xf]
        %v649 = vld [vmem:[%s6 + $0x4] sm:$0xf]
        %v650 = vld [vmem:[%s6 + $0x8] sm:$0xf]
        %v651 = vld [vmem:[%s6 + $0xc] sm:$0xf]
        %v652 = vld [vmem:[%s6 + $0x10] sm:$0xf]
        %v653 = vld [vmem:[%s6 + $0x14] sm:$0xf]
        %v654 = vld [vmem:[%s6 + $0x18] sm:$0xf]
        %v655 = vld [vmem:[%s6 + $0x1c] sm:$0xf]
        %v664 = vunpack.c.l.b16 %v648
        %v665 = vunpack.c.l.b16 %v649
        %v666 = vunpack.c.l.b16 %v650
        %v667 = vunpack.c.l.b16 %v651
        %v668 = vunpack.c.l.b16 %v652
        %v669 = vunpack.c.l.b16 %v653
        %v670 = vunpack.c.l.b16 %v654
        %v671 = vunpack.c.l.b16 %v655
        %v672 = vpack.c.b16 %v665, %v664
        %v673 = vpack.c.b16 %v667, %v666
        %v674 = vpack.c.b16 %v669, %v668
        %v675 = vpack.c.b16 %v671, %v670
        %680 = vmatpush.bf16.msra.mxu0 0
        %681 = vmatpush.bf16.msra.mxu0 0
        %682 = vmatpush.bf16.msra.mxu0 0
        %683 = vmatpush.bf16.msra.mxu0 0
        %684 = vmatpush.bf16.msra.mxu0 %v675
        %685 = vmatpush.bf16.msra.mxu0 %v674
        %686 = vmatpush.bf16.msra.mxu0 %v673
        %687 = vmatpush.bf16.msra.mxu0 %v672
        %688 = vmatmul.bf16.gmra.mxu0 %v633
        %v689 = vpop.f32.mrf.mxu0
        %v690 = vadd.f32 0.0, %v689
        %v691 = vpop.f32.mrf.mxu0
        %692 = vdwg.mxu0
        %v693 = vld [vmem:[%s7] sm:$0xf]
        %v694 = vld [vmem:[%s7 + $0x4] sm:$0xf]
        %v695 = vld [vmem:[%s7 + $0x8] sm:$0xf]
        %v696 = vld [vmem:[%s7 + $0xc] sm:$0xf]
        %v697 = vld [vmem:[%s7 + $0x10] sm:$0xf]
        %v698 = vld [vmem:[%s7 + $0x14] sm:$0xf]
        %v699 = vld [vmem:[%s7 + $0x18] sm:$0xf]
        %v700 = vld [vmem:[%s7 + $0x1c] sm:$0xf]
        %v709 = vunpack.c.l.b16 %v693
        %v710 = vunpack.c.l.b16 %v694
        %v711 = vunpack.c.l.b16 %v695
        %v712 = vunpack.c.l.b16 %v696
        %v713 = vunpack.c.l.b16 %v697
        %v714 = vunpack.c.l.b16 %v698
        %v715 = vunpack.c.l.b16 %v699
        %v716 = vunpack.c.l.b16 %v700
        %v717 = vpack.c.b16 %v710, %v709
        %v718 = vpack.c.b16 %v712, %v711
        %v719 = vpack.c.b16 %v714, %v713
        %v720 = vpack.c.b16 %v716, %v715
        %725 = vmatpush.bf16.msra.mxu0 0
        %726 = vmatpush.bf16.msra.mxu0 0
        %727 = vmatpush.bf16.msra.mxu0 0
        %728 = vmatpush.bf16.msra.mxu0 0
        %729 = vmatpush.bf16.msra.mxu0 %v720
        %730 = vmatpush.bf16.msra.mxu0 %v719
        %731 = vmatpush.bf16.msra.mxu0 %v718
        %732 = vmatpush.bf16.msra.mxu0 %v717
        %733 = vmatmul.bf16.gmra.mxu0 %v633
        %v734 = vpop.f32.mrf.mxu0
        %v735 = vadd.f32 0.0, %v734
        %v736 = vpop.f32.mrf.mxu0
        %737 = vdwg.mxu0
        %v738 = vld [vmem:[%s8] sm:$0x1]
        %v739 = vld [vmem:[%s9] sm:$0x1]
        %v740 = vsel %vm565, %v645, 0.0
        %741 = vadd.xlane.f32.xlu0 %v740
        %v742 = vpop.xlane.xlu0 %741
        %v743 = vmul.f32 %v742, %v575
        %v744 = vsub.f32 %v645, %v743
        %v745 = vmul.f32 %v744, %v744
        %v746 = vsel %vm565, %v745, 0.0
        %747 = vadd.xlane.f32.xlu0 %v746
        %v748 = vpop.xlane.xlu0 %747
        %v749 = vmul.f32 %v748, %v575
        %v750 = vadd.f32 %v749, 1e-05
        %v751 = vrsqrt.pop %v750
        %v752 = vmul.f32 %v751, %v750
        %v753 = vmul.f32 %v752, %v751
        %v754 = vmul.f32 0.5, %v753
        %v755 = vsub.f32 1.5, %v754
        %v756 = vmul.f32 %v751, %v755
        %vm757 = vweird.f32 %v750
        %vm758 = vweird.f32 %v751
        %vm759 = vmor %vm757, %vm758
        %v760 = vsel %vm759, %v751, %v756
        %v761 = vmul.f32 %v744, %v760
        %v763 = vperm.slane %v738, 0
        %v765 = vmul.f32 %v761, %v763
        %v767 = vperm.slane %v739, 0
        %v769 = vadd.f32 %v765, %v767
        %v770 = vld [vmem:[%s10] sm:$0x1]
        %v771 = vld [vmem:[%s11] sm:$0x1]
        %vm772 = vcmask 261120
        %v773 = vsel %vm772, %v690, 0.0
        %774 = vadd.xlane.f32.xlu0 %v773
        %v775 = vpop.xlane.xlu0 %774
        %v776 = vrcp.pop 32.0
        %v777 = vmul.f32 32.0, %v776
        %v778 = vsub.f32 1.0, %v777
        %v779 = vmul.f32 %v776, %v778
        %v780 = vadd.f32 %v776, %v779
        %vm781 = vweird.f32 %v776
        %v782 = vsel %vm781, %v776, %v780
        %v783 = vmul.f32 %v775, %v782
        %v784 = vsub.f32 %v690, %v783
        %v785 = vmul.f32 %v784, %v784
        %v786 = vsel %vm772, %v785, 0.0
        %787 = vadd.xlane.f32.xlu0 %v786
        %v788 = vpop.xlane.xlu0 %787
        %v789 = vmul.f32 %v788, %v782
        %v790 = vadd.f32 %v789, 1e-05
        %v791 = vrsqrt.pop %v790
        %v792 = vmul.f32 %v791, %v790
        %v793 = vmul.f32 %v792, %v791
        %v794 = vmul.f32 0.5, %v793
        %v795 = vsub.f32 1.5, %v794
        %v796 = vmul.f32 %v791, %v795
        %vm797 = vweird.f32 %v790
        %vm798 = vweird.f32 %v791
        %vm799 = vmor %vm797, %vm798
        %v800 = vsel %vm799, %v791, %v796
        %v801 = vmul.f32 %v784, %v800
        %v803 = vperm.slane %v770, 0
        %v805 = vmul.f32 %v801, %v803
        %v807 = vperm.slane %v771, 0
        %v809 = vadd.f32 %v805, %v807
        %v810 = vld [vmem:[%s556] sm:$0xff]
        %v811 = vld [vmem:[%s560] sm:$0xff]
        %813 = vrot.lane.b32.xlu0 %v810, 16
        %v814 = vpop.permute.xlu0 %813
        %816 = vrot.lane.b32.xlu0 %v810, 32
        %v817 = vpop.permute.xlu0 %816
        %819 = vrot.lane.b32.xlu0 %v810, 48
        %v820 = vpop.permute.xlu0 %819
        %vm822 = vcmask 130048
        %v823 = vsel %vm822, %v810, %v814
        %v824 = vsel %vm772, %v823, %v817
        %vm825 = vcmask 392192
        %v826 = vsel %vm825, %v824, %v820
        %828 = vrot.lane.b32.xlu0 %v811, 16
        %v829 = vpop.permute.xlu0 %828
        %831 = vrot.lane.b32.xlu0 %v811, 32
        %v832 = vpop.permute.xlu0 %831
        %834 = vrot.lane.b32.xlu0 %v811, 48
        %v835 = vpop.permute.xlu0 %834
        %v837 = vsel %vm822, %v811, %v829
        %v838 = vsel %vm772, %v837, %v832
        %v839 = vsel %vm825, %v838, %v835
        %v840 = vlaneseq
        %v841 = vand.u32 %v840, 127
        %vm842 = vcmp.lt.s32.totalorder %v841, 0
        %v843 = vsub.s32 0, %v841
        %v844 = vsel %vm842, %v843, %v841
        %v845 = vshrl.u32 %v844, 1
        %v846 = vand.u32 %v844, 1
        %v847 = vsub.s32 0, %v846
        %v848 = vsel %vm842, %v847, %v846
        %vm849 = vcmp.ne.s32.totalorder %v848, 0
        %vm850 = vcmp.lt.s32.totalorder %v848, 0
        %vm851 = vmand %vm850, %vm849
        %v852 = vadd.s32 %v848, 2
        %v853 = vsel %vm851, %v852, %v848
        %vm854 = vcmp.eq.s32.totalorder %v853, 0
        %vm855 = vcmask 1048064
        %856 = vrot.lane.b32.xlu0 %v769, 64
        %v857 = vpop.permute.xlu0 %856
        %v858 = vsel %vm855, %v857, %v769
        %859 = vrot.lane.b32.xlu0 %v858, 64
        %v860 = vpop.permute.xlu0 %859
        %v861 = vsel %vm855, %v860, %v769
        %863 = vrot.lane.b32.xlu0 %v861, 127
        %v864 = vpop.permute.xlu0 %863
        %866 = vrot.lane.b32.xlu0 %v861, 65
        %v867 = vpop.permute.xlu0 %866
        %v869 = vsel %vm854, %v864, %v867
        %v870 = vmul.f32 %v769, %v826
        %v871 = vmul.f32 %v869, %v839
        %v872 = vadd.f32 %v870, %v871
        %v873 = vpack.c.bf16 %v872, %v872
        %vm874 = vcmask 519168
        %875 = vst.msk [vmem:[%s527] sm:$0xf] %vm874, %v873
        %vm876 = vcmask 1047808
        %877 = vrot.lane.b32.xlu0 %v809, 32
        %v878 = vpop.permute.xlu0 %877
        %v879 = vsel %vm876, %v878, %v809
        %880 = vrot.lane.b32.xlu0 %v879, 32
        %v881 = vpop.permute.xlu0 %880
        %v882 = vsel %vm876, %v881, %v809
        %884 = vrot.lane.b32.xlu0 %v882, 127
        %v885 = vpop.permute.xlu0 %884
        %887 = vrot.lane.b32.xlu0 %v882, 97
        %v888 = vpop.permute.xlu0 %887
        %v890 = vsel %vm854, %v885, %v888
        %v891 = vmul.f32 %v809, %v823
        %v892 = vmul.f32 %v890, %v837
        %v893 = vadd.f32 %v891, %v892
        %v894 = vpack.c.bf16 %v893, %v893
        %vm895 = vcmask 257024
        %896 = vst.msk [vmem:[%s534] sm:$0xf] %vm895, %v894
        %v897 = vpack.c.bf16 %v735, %v735
        %898 = vst.msk [vmem:[%s541] sm:$0xf] %vm895, %v897
        %s899 = sand.u32 %s328, 1
        %s900 = scalar_lea.sflag [#allocation3], %s899
        %s901 = sand.u32 %s328, 1
        %s902 = smul.addr %s901, 4
        %s903 = scalar_lea.vmem [#allocation2], %s902
        %s904 = sand.u32 %s32, 1
        %s905 = scalar_lea.sflag [#allocation5], %s904
        %s906 = sand.u32 %s356, 1
        %s907 = smul.addr %s906, 4
        %s908 = scalar_lea.vmem [#allocation4], %s907
        %s909 = sand.u32 %s32, 1
        %s910 = scalar_lea.sflag [#allocation5], %s909
        %s911 = sand.u32 %s384, 1
        %s912 = smul.addr %s911, 4
        %s913 = scalar_lea.vmem [#allocation6], %s912
        // Predicated region
        $region69: #{tpu_custom_call.1} parent=67 // pred_check
          %p914 = pneg %p338
        $region70: #{tpu_custom_call.1} parent=67 // pred_check_branch
          %916 = sbr.rel (%p914) target = $region72
        $region71: #{tpu_custom_call.1} parent=67 // pred_region
          %918 = vsyncadd %s900, 0
          %s919 = sadd.s32 %s37, %s36
          %s920 = smul.addr %s919, 4
          %s921 = scalar_lea.hbm %s12, %s920
          %s923 = sshll.u32 %s903, 4
          %s924 = int_to_ptr.vmem [resolvable:$true] %s923
          %s925 = sshll.u32 %s921, 4
          %s926 = int_to_ptr.hbm [resolvable:$true] %s925
          %928 = dma.vmem_to_hbm [thread:$0]  %s924, 64, %s926, %s900
        $region72: #{tpu_custom_call.1} parent=67 // pred_fallthru
          _
        // Predicated region
        $region73: #{tpu_custom_call.1} parent=67 // pred_check
          %p929 = pneg %p366
        $region74: #{tpu_custom_call.1} parent=67 // pred_check_branch
          %931 = sbr.rel (%p929) target = $region76
        $region75: #{tpu_custom_call.1} parent=67 // pred_region
          %933 = vsyncadd %s905, 0
          %s934 = sadd.s32 %s37, %s36
          %s935 = smul.addr %s934, 4
          %s936 = scalar_lea.hbm %s13, %s935
          %s938 = sshll.u32 %s908, 4
          %s939 = int_to_ptr.vmem [resolvable:$true] %s938
          %s940 = sshll.u32 %s936, 4
          %s941 = int_to_ptr.hbm [resolvable:$true] %s940
          %943 = dma.vmem_to_hbm [thread:$0]  %s939, 64, %s941, %s905
        $region76: #{tpu_custom_call.1} parent=67 // pred_fallthru
          _
        // Predicated region
        $region77: #{tpu_custom_call.1} parent=67 // pred_check
          %p944 = pneg %p394
        $region78: #{tpu_custom_call.1} parent=67 // pred_check_branch
          %946 = sbr.rel (%p944) target = $region80
        $region79: #{tpu_custom_call.1} parent=67 // pred_region
          %948 = vsyncadd %s910, 0
          %s949 = sadd.s32 %s37, %s36
          %s950 = smul.addr %s949, 4
          %s951 = scalar_lea.hbm %s14, %s950
          %s953 = sshll.u32 %s913, 4
          %s954 = int_to_ptr.vmem [resolvable:$true] %s953
          %s955 = sshll.u32 %s951, 4
          %s956 = int_to_ptr.hbm [resolvable:$true] %s955
          %958 = dma.vmem_to_hbm [thread:$0]  %s954, 64, %s956, %s910
        $region80: #{tpu_custom_call.1} parent=67 // pred_fallthru
          _
      $region68: #{tpu_custom_call.1} parent=5 // pred_fallthru
        _
      %p959 = scmp.le.s32.totalorder 2, %s27
      // Predicated region
      $region81: #{tpu_custom_call.1} parent=5 // pred_check
        %p960 = pneg %p959
      $region82: #{tpu_custom_call.1} parent=5 // pred_check_branch
        %962 = sbr.rel (%p960) target = $region84
      $region83: #{tpu_custom_call.1} parent=5 // pred_region
        %s963 = ssub.s32 %s27, 2
        // Predicated region
        $region85: #{tpu_custom_call.1} parent=83 // pred_check
          %p964 = pneg %p344
        $region86: #{tpu_custom_call.1} parent=83 // pred_check_branch
          %966 = sbr.rel (%p964) target = $region88
        $region87: #{tpu_custom_call.1} parent=83 // pred_region
          %s967 = sand.u32 %s329, 1
          %s968 = scalar_lea.sflag [#allocation3], %s967
          %s969 = sand.u32 %s329, 1
          %s970 = smul.addr %s969, 4
          %s971 = scalar_lea.vmem [#allocation2], %s970
          %973 = dma.done %s968, 64
        $region88: #{tpu_custom_call.1} parent=83 // pred_fallthru
          _
        // Predicated region
        $region89: #{tpu_custom_call.1} parent=83 // pred_check
          %p974 = pneg %p372
        $region90: #{tpu_custom_call.1} parent=83 // pred_check_branch
          %976 = sbr.rel (%p974) target = $region92
        $region91: #{tpu_custom_call.1} parent=83 // pred_region
          %s977 = sand.u32 %s33, 1
          %s978 = scalar_lea.sflag [#allocation5], %s977
          %s979 = sand.u32 %s357, 1
          %s980 = smul.addr %s979, 4
          %s981 = scalar_lea.vmem [#allocation4], %s980
          %983 = dma.done %s978, 64
        $region92: #{tpu_custom_call.1} parent=83 // pred_fallthru
          _
        // Predicated region
        $region93: #{tpu_custom_call.1} parent=83 // pred_check
          %p984 = pneg %p400
        $region94: #{tpu_custom_call.1} parent=83 // pred_check_branch
          %986 = sbr.rel (%p984) target = $region96
        $region95: #{tpu_custom_call.1} parent=83 // pred_region
          %s987 = sand.u32 %s33, 1
          %s988 = scalar_lea.sflag [#allocation5], %s987
          %s989 = sand.u32 %s385, 1
          %s990 = smul.addr %s989, 4
          %s991 = scalar_lea.vmem [#allocation6], %s990
          %993 = dma.done %s988, 64
        $region96: #{tpu_custom_call.1} parent=83 // pred_fallthru
          _
      $region84: #{tpu_custom_call.1} parent=5 // pred_fallthru
        _
    $region6: #{tpu_custom_call.1} parent=1 // loop_footer
      %s31 = sadd.s32 1, %s27
    $region7: #{tpu_custom_call.1} parent=1 // loop_footer_branch
      %26 = sbr.rel target = $region3
    $region8: #{tpu_custom_call.1} parent=1 // loop_exit
      _
    %994 = vsyncpa [#allocation3], 1
    %s995 = scalar_lea.sflag [#allocation3], 1
    %996 = vsyncpa %s995, 1
    %997 = vsyncpa [#allocation5], 1
    %s998 = scalar_lea.sflag [#allocation5], 1
    %999 = vsyncpa %s998, 1

// kernel: tpu_custom_call.1
$region0: #{tpu_custom_call.1}
  #allocation0 [shape = 'u32[]', space=smem, size = 0x4, offset = 0x4, fixed_abs, tag = 'smem constant byte address 0x4 - core index']
  #allocation1 [shape = 'u32[72,128]{1,0:T(1,128)}', space=vmem, size = 0x9000, scoped, tag = 'internal scratch']
  %s0 = inlined_call_operand.vmem [shape: f32[2,8,64], index: 0, kind: input, shape index: {}]
  %s1 = inlined_call_operand.vmem [shape: f32[2,3,64], index: 1, kind: input, shape index: {}]
  %s2 = inlined_call_operand.vmem [shape: f32[8,16], index: 2, kind: input, shape index: {}]
  %s3 = inlined_call_operand.vmem [shape: f32[8,16], index: 3, kind: input, shape index: {}]
  %s4 = inlined_call_operand.vmem [shape: f32[1,64], index: 4, kind: input, shape index: {}]
  %s5 = inlined_call_operand.vmem [shape: bf16[64,64], index: 5, kind: input, shape index: {}]
  %s6 = inlined_call_operand.vmem [shape: bf16[64,32], index: 6, kind: input, shape index: {}]
  %s7 = inlined_call_operand.vmem [shape: bf16[64,32], index: 7, kind: input, shape index: {}]
  %s8 = inlined_call_operand.vmem [shape: f32[1,64], index: 8, kind: input, shape index: {}]
  %s9 = inlined_call_operand.vmem [shape: f32[1,64], index: 9, kind: input, shape index: {}]
  %s10 = inlined_call_operand.vmem [shape: f32[1,32], index: 10, kind: input, shape index: {}]
  %s11 = inlined_call_operand.vmem [shape: f32[1,32], index: 11, kind: input, shape index: {}]
  %s12 = inlined_call_operand.hbm [shape: bf16[2,8,64], index: 12, kind: output, shape index: {0}]
  %s13 = inlined_call_operand.hbm [shape: bf16[2,8,32], index: 13, kind: output, shape index: {1}]
  %s14 = inlined_call_operand.hbm [shape: bf16[2,8,32], index: 14, kind: output, shape index: {2}]
  %15 = xla_tuple %s12, %s13, %s14
  %s16 = sld [smem:[#allocation0]]
  $region97: #{tpu_custom_call.1} parent=0
    _
  %s18 = ssub.s32 1, %s16
  %s19 = scalar_select 0, %s18, %s16
  $region1: #{tpu_custom_call.1} parent=0
    #allocation2 [shape = 'u8[4096]{0}', space=vmem, size = 0x1000, scoped, tag = 'output window, operand 0']
    #allocation3 [shape = 's32[2]{0}', space=sflag, size = 0x8, scoped, tag = 'scoped memory for tpu_custom_call.1']
    #allocation4 [shape = 'u8[4096]{0}', space=vmem, size = 0x1000, scoped, tag = 'output window, operand 1']
    #allocation5 [shape = 's32[2]{0}', space=sflag, size = 0x8, scoped, tag = 'scoped memory for tpu_custom_call.1']
    #allocation6 [shape = 'u8[4096]{0}', space=vmem, size = 0x1000, scoped, tag = 'output window, operand 2']
    %20 = vsyncpa [#allocation3], 0
    %s21 = scalar_lea.sflag [#allocation3], 1
    %22 = vsyncpa %s21, 0
    %23 = vsyncpa [#allocation5], 0
    %s24 = scalar_lea.sflag [#allocation5], 1
    %25 = vsyncpa %s24, 0
    loop: start=0, step=1, limit=4
    $region2: #{tpu_custom_call.1} parent=1 // loop_pre_header
      _
    $region3: #{tpu_custom_call.1} parent=1 // loop_header
      %s27 = sphi 0, %s31
      %p28 = scmp.ge.s32.totalorder %s27, 4
      %s34 = sphi 0, %s46
      %s35 = sphi 0, %s42
      %s36 = sphi 0, %s34
      %s37 = sphi 0, %s35
      %s38 = sphi 0, %s36
      %s39 = sphi 0, %s37
      %s51 = sphi 0, %s53
      %s54 = sphi 0, %s51
      %s55 = sphi 0, %s54
      %s71 = sphi 0, %s55
      %s77 = sphi 0, %s79
      %s80 = sphi 0, %s77
      %s81 = sphi 0, %s80
      %s97 = sphi 0, %s81
      %s103 = sphi 0, %s105
      %s106 = sphi 0, %s103
      %s107 = sphi 0, %s106
      %s123 = sphi 0, %s107
      %s129 = sphi 0, %s131
      %s132 = sphi 0, %s129
      %s133 = sphi 0, %s132
      %s149 = sphi 0, %s133
      %s153 = sphi 0, %s153
      %s155 = sphi 0, %s153
      %s156 = sphi 0, %s155
      %s170 = sphi 0, %s156
      %s174 = sphi 0, %s174
      %s176 = sphi 0, %s174
      %s177 = sphi 0, %s176
      %s191 = sphi 0, %s177
      %s195 = sphi 0, %s195
      %s197 = sphi 0, %s195
      %s198 = sphi 0, %s197
      %s212 = sphi 0, %s198
      %s216 = sphi 0, %s216
      %s218 = sphi 0, %s216
      %s219 = sphi 0, %s218
      %s233 = sphi 0, %s219
      %s237 = sphi 0, %s237
      %s239 = sphi 0, %s237
      %s240 = sphi 0, %s239
      %s254 = sphi 0, %s240
      %s258 = sphi 0, %s258
      %s260 = sphi 0, %s258
      %s261 = sphi 0, %s260
      %s275 = sphi 0, %s261
      %s279 = sphi 0, %s279
      %s281 = sphi 0, %s279
      %s282 = sphi 0, %s281
      %s296 = sphi 0, %s282
      %s300 = sphi 0, %s300
      %s302 = sphi 0, %s300
      %s303 = sphi 0, %s302
      %s317 = sphi 0, %s303
      %s325 = sphi 0, %s327
      %s328 = sphi 0, %s325
      %s329 = sphi 0, %s328
      %s345 = sphi 0, %s329
      %s353 = sphi 0, %s355
      %s356 = sphi 0, %s353
      %s357 = sphi 0, %s356
      %s373 = sphi 0, %s357
      %s381 = sphi 0, %s383
      %s384 = sphi 0, %s381
      %s385 = sphi 0, %s384
      %s401 = sphi 0, %s385
    $region4: #{tpu_custom_call.1} parent=1 // loop_header_branch
      %30 = sbr.rel (%p28) target = $region8
    $region5: #{tpu_custom_call.1} parent=1 // loop_body
      %s32 = ssub.s32 %s27, 1
      %s33 = ssub.s32 %s27, 2
      %s40 = sadd.s32 1, %s35
      %p41 = scmp.ge.s32.totalorder %s40, 1
      %s42 = scalar_select %p41, 0, %s40
      %s43 = sadd.s32 1, %s34
      %s44 = scalar_select %p41, %s43, %s34
      %p45 = scmp.ge.s32.totalorder %s44, 2
      %s46 = scalar_select %p45, 0, %s44
      %s47 = ssub.s32 %s34, %s46
      %s48 = ssub.s32 %s35, %s42
      %s49 = sor.u32 %s47, %s48
      %p50 = scmp.eq.s32.totalorder %s49, 0
      %s52 = sadd.s32 %s51, 1
      %s53 = scalar_select %p50, %s51, %s52
      %p56 = pneg %p50
      %p57 = scmp.eq.s32.totalorder %s27, 1
      %p58 = por %p56, %p57
      %p59 = scmp.ne.s32.totalorder %s51, %s54
      %p60 = scmp.eq.s32.totalorder %s27, 0
      %p61 = por %p59, %p60
      %p62 = scmp.ne.s32.totalorder %s51, %s54
      %p63 = scmp.eq.s32.totalorder %s32, 1
      %p64 = por %p62, %p63
      %p65 = scmp.ne.s32.totalorder %s54, %s55
      %p66 = scmp.eq.s32.totalorder %s32, 0
      %p67 = por %p65, %p66
      %p68 = scmp.ne.s32.totalorder %s54, %s55
      %p69 = scmp.eq.s32.totalorder %s33, 1
      %p70 = por %p68, %p69
      %p72 = scmp.ne.s32.totalorder %s55, %s71
      %p73 = scmp.eq.s32.totalorder %s33, 0
      %p74 = por %p72, %p73
      %s75 = ssub.s32 %s34, %s46
      %p76 = scmp.eq.s32.totalorder %s75, 0
      %s78 = sadd.s32 %s77, 1
      %s79 = scalar_select %p76, %s77, %s78
      %p82 = pneg %p76
      %p83 = scmp.eq.s32.totalorder %s27, 1
      %p84 = por %p82, %p83
      %p85 = scmp.ne.s32.totalorder %s77, %s80
      %p86 = scmp.eq.s32.totalorder %s27, 0
      %p87 = por %p85, %p86
      %p88 = scmp.ne.s32.totalorder %s77, %s80
      %p89 = scmp.eq.s32.totalorder %s32, 1
      %p90 = por %p88, %p89
      %p91 = scmp.ne.s32.totalorder %s80, %s81
      %p92 = scmp.eq.s32.totalorder %s32, 0
      %p93 = por %p91, %p92
      %p94 = scmp.ne.s32.totalorder %s80, %s81
      %p95 = scmp.eq.s32.totalorder %s33, 1
      %p96 = por %p94, %p95
      %p98 = scmp.ne.s32.totalorder %s81, %s97
      %p99 = scmp.eq.s32.totalorder %s33, 0
      %p100 = por %p98, %p99
      %s101 = ssub.s32 %s35, %s42
      %p102 = scmp.eq.s32.totalorder %s101, 0
      %s104 = sadd.s32 %s103, 1
      %s105 = scalar_select %p102, %s103, %s104
      %p108 = pneg %p102
      %p109 = scmp.eq.s32.totalorder %s27, 1
      %p110 = por %p108, %p109
      %p111 = scmp.ne.s32.totalorder %s103, %s106
      %p112 = scmp.eq.s32.totalorder %s27, 0
      %p113 = por %p111, %p112
      %p114 = scmp.ne.s32.totalorder %s103, %s106
      %p115 = scmp.eq.s32.totalorder %s32, 1
      %p116 = por %p114, %p115
      %p117 = scmp.ne.s32.totalorder %s106, %s107
      %p118 = scmp.eq.s32.totalorder %s32, 0
      %p119 = por %p117, %p118
      %p120 = scmp.ne.s32.totalorder %s106, %s107
      %p121 = scmp.eq.s32.totalorder %s33, 1
      %p122 = por %p120, %p121
      %p124 = scmp.ne.s32.totalorder %s107, %s123
      %p125 = scmp.eq.s32.totalorder %s33, 0
      %p126 = por %p124, %p125
      %s127 = ssub.s32 %s35, %s42
      %p128 = scmp.eq.s32.totalorder %s127, 0
      %s130 = sadd.s32 %s129, 1
      %s131 = scalar_select %p128, %s129, %s130
      %p134 = pneg %p128
      %p135 = scmp.eq.s32.totalorder %s27, 1
      %p136 = por %p134, %p135
      %p137 = scmp.ne.s32.totalorder %s129, %s132
      %p138 = scmp.eq.s32.totalorder %s27, 0
      %p139 = por %p137, %p138
      %p140 = scmp.ne.s32.totalorder %s129, %s132
      %p141 = scmp.eq.s32.totalorder %s32, 1
      %p142 = por %p140, %p141
      %p143 = scmp.ne.s32.totalorder %s132, %s133
      %p144 = scmp.eq.s32.totalorder %s32, 0
      %p145 = por %p143, %p144
      %p146 = scmp.ne.s32.totalorder %s132, %s133
      %p147 = scmp.eq.s32.totalorder %s33, 1
      %p148 = por %p146, %p147
      %p150 = scmp.ne.s32.totalorder %s133, %s149
      %p151 = scmp.eq.s32.totalorder %s33, 0
      %p152 = por %p150, %p151
      %s154 = sadd.s32 %s153, 1
      %p157 = scmp.eq.s32.totalorder %s27, 1
      %p158 = scmp.ne.s32.totalorder %s153, %s155
      %p159 = scmp.eq.s32.totalorder %s27, 0
      %p160 = por %p158, %p159
      %p161 = scmp.ne.s32.totalorder %s153, %s155
      %p162 = scmp.eq.s32.totalorder %s32, 1
      %p163 = por %p161, %p162
      %p164 = scmp.ne.s32.totalorder %s155, %s156
      %p165 = scmp.eq.s32.totalorder %s32, 0
      %p166 = por %p164, %p165
      %p167 = scmp.ne.s32.totalorder %s155, %s156
      %p168 = scmp.eq.s32.totalorder %s33, 1
      %p169 = por %p167, %p168
      %p171 = scmp.ne.s32.totalorder %s156, %s170
      %p172 = scmp.eq.s32.totalorder %s33, 0
      %p173 = por %p171, %p172
      %s175 = sadd.s32 %s174, 1
      %p178 = scmp.eq.s32.totalorder %s27, 1
      %p179 = scmp.ne.s32.totalorder %s174, %s176
      %p180 = scmp.eq.s32.totalorder %s27, 0
      %p181 = por %p179, %p180
      %p182 = scmp.ne.s32.totalorder %s174, %s176
      %p183 = scmp.eq.s32.totalorder %s32, 1
      %p184 = por %p182, %p183
      %p185 = scmp.ne.s32.totalorder %s176, %s177
      %p186 = scmp.eq.s32.totalorder %s32, 0
      %p187 = por %p185, %p186
      %p188 = scmp.ne.s32.totalorder %s176, %s177
      %p189 = scmp.eq.s32.totalorder %s33, 1
      %p190 = por %p188, %p189
      %p192 = scmp.ne.s32.totalorder %s177, %s191
      %p193 = scmp.eq.s32.totalorder %s33, 0
      %p194 = por %p192, %p193
      %s196 = sadd.s32 %s195, 1
      %p199 = scmp.eq.s32.totalorder %s27, 1
      %p200 = scmp.ne.s32.totalorder %s195, %s197
      %p201 = scmp.eq.s32.totalorder %s27, 0
      %p202 = por %p200, %p201
      %p203 = scmp.ne.s32.totalorder %s195, %s197
      %p204 = scmp.eq.s32.totalorder %s32, 1
      %p205 = por %p203, %p204
      %p206 = scmp.ne.s32.totalorder %s197, %s198
      %p207 = scmp.eq.s32.totalorder %s32, 0
      %p208 = por %p206, %p207
      %p209 = scmp.ne.s32.totalorder %s197, %s198
      %p210 = scmp.eq.s32.totalorder %s33, 1
      %p211 = por %p209, %p210
      %p213 = scmp.ne.s32.totalorder %s198, %s212
      %p214 = scmp.eq.s32.totalorder %s33, 0
      %p215 = por %p213, %p214
      %s217 = sadd.s32 %s216, 1
      %p220 = scmp.eq.s32.totalorder %s27, 1
      %p221 = scmp.ne.s32.totalorder %s216, %s218
      %p222 = scmp.eq.s32.totalorder %s27, 0
      %p223 = por %p221, %p222
      %p224 = scmp.ne.s32.totalorder %s216, %s218
      %p225 = scmp.eq.s32.totalorder %s32, 1
      %p226 = por %p224, %p225
      %p227 = scmp.ne.s32.totalorder %s218, %s219
      %p228 = scmp.eq.s32.totalorder %s32, 0
      %p229 = por %p227, %p228
      %p230 = scmp.ne.s32.totalorder %s218, %s219
      %p231 = scmp.eq.s32.totalorder %s33, 1
      %p232 = por %p230, %p231
      %p234 = scmp.ne.s32.totalorder %s219, %s233
      %p235 = scmp.eq.s32.totalorder %s33, 0
      %p236 = por %p234, %p235
      %s238 = sadd.s32 %s237, 1
      %p241 = scmp.eq.s32.totalorder %s27, 1
      %p242 = scmp.ne.s32.totalorder %s237, %s239
      %p243 = scmp.eq.s32.totalorder %s27, 0
      %p244 = por %p242, %p243
      %p245 = scmp.ne.s32.totalorder %s237, %s239
      %p246 = scmp.eq.s32.totalorder %s32, 1
      %p247 = por %p245, %p246
      %p248 = scmp.ne.s32.totalorder %s239, %s240
      %p249 = scmp.eq.s32.totalorder %s32, 0
      %p250 = por %p248, %p249
      %p251 = scmp.ne.s32.totalorder %s239, %s240
      %p252 = scmp.eq.s32.totalorder %s33, 1
      %p253 = por %p251, %p252
      %p255 = scmp.ne.s32.totalorder %s240, %s254
      %p256 = scmp.eq.s32.totalorder %s33, 0
      %p257 = por %p255, %p256
      %s259 = sadd.s32 %s258, 1
      %p262 = scmp.eq.s32.totalorder %s27, 1
      %p263 = scmp.ne.s32.totalorder %s258, %s260
      %p264 = scmp.eq.s32.totalorder %s27, 0
      %p265 = por %p263, %p264
      %p266 = scmp.ne.s32.totalorder %s258, %s260
      %p267 = scmp.eq.s32.totalorder %s32, 1
      %p268 = por %p266, %p267
      %p269 = scmp.ne.s32.totalorder %s260, %s261
      %p270 = scmp.eq.s32.totalorder %s32, 0
      %p271 = por %p269, %p270
      %p272 = scmp.ne.s32.totalorder %s260, %s261
      %p273 = scmp.eq.s32.totalorder %s33, 1
      %p274 = por %p272, %p273
      %p276 = scmp.ne.s32.totalorder %s261, %s275
      %p277 = scmp.eq.s32.totalorder %s33, 0
      %p278 = por %p276, %p277
      %s280 = sadd.s32 %s279, 1
      %p283 = scmp.eq.s32.totalorder %s27, 1
      %p284 = scmp.ne.s32.totalorder %s279, %s281
      %p285 = scmp.eq.s32.totalorder %s27, 0
      %p286 = por %p284, %p285
      %p287 = scmp.ne.s32.totalorder %s279, %s281
      %p288 = scmp.eq.s32.totalorder %s32, 1
      %p289 = por %p287, %p288
      %p290 = scmp.ne.s32.totalorder %s281, %s282
      %p291 = scmp.eq.s32.totalorder %s32, 0
      %p292 = por %p290, %p291
      %p293 = scmp.ne.s32.totalorder %s281, %s282
      %p294 = scmp.eq.s32.totalorder %s33, 1
      %p295 = por %p293, %p294
      %p297 = scmp.ne.s32.totalorder %s282, %s296
      %p298 = scmp.eq.s32.totalorder %s33, 0
      %p299 = por %p297, %p298
      %s301 = sadd.s32 %s300, 1
      %p304 = scmp.eq.s32.totalorder %s27, 1
      %p305 = scmp.ne.s32.totalorder %s300, %s302
      %p306 = scmp.eq.s32.totalorder %s27, 0
      %p307 = por %p305, %p306
      %p308 = scmp.ne.s32.totalorder %s300, %s302
      %p309 = scmp.eq.s32.totalorder %s32, 1
      %p310 = por %p308, %p309
      %p311 = scmp.ne.s32.totalorder %s302, %s303
      %p312 = scmp.eq.s32.totalorder %s32, 0
      %p313 = por %p311, %p312
      %p314 = scmp.ne.s32.totalorder %s302, %s303
      %p315 = scmp.eq.s32.totalorder %s33, 1
      %p316 = por %p314, %p315
      %p318 = scmp.ne.s32.totalorder %s303, %s317
      %p319 = scmp.eq.s32.totalorder %s33, 0
      %p320 = por %p318, %p319
      %s321 = ssub.s32 %s34, %s46
      %s322 = ssub.s32 %s35, %s42
      %s323 = sor.u32 %s321, %s322
      %p324 = scmp.eq.s32.totalorder %s323, 0
      %s326 = sadd.s32 %s325, 1
      %s327 = scalar_select %p324, %s325, %s326
      %p330 = pneg %p324
      %p331 = scmp.eq.s32.totalorder %s27, 1
      %p332 = por %p330, %p331
      %p333 = scmp.ne.s32.totalorder %s325, %s328
      %p334 = scmp.eq.s32.totalorder %s27, 0
      %p335 = por %p333, %p334
      %p336 = scmp.ne.s32.totalorder %s325, %s328
      %p337 = scmp.eq.s32.totalorder %s32, 1
      %p338 = por %p336, %p337
      %p339 = scmp.ne.s32.totalorder %s328, %s329
      %p340 = scmp.eq.s32.totalorder %s32, 0
      %p341 = por %p339, %p340
      %p342 = scmp.ne.s32.totalorder %s328, %s329
      %p343 = scmp.eq.s32.totalorder %s33, 1
      %p344 = por %p342, %p343
      %p346 = scmp.ne.s32.totalorder %s329, %s345
      %p347 = scmp.eq.s32.totalorder %s33, 0
      %p348 = por %p346, %p347
      %s349 = ssub.s32 %s34, %s46
      %s350 = ssub.s32 %s35, %s42
      %s351 = sor.u32 %s349, %s350
      %p352 = scmp.eq.s32.totalorder %s351, 0
      %s354 = sadd.s32 %s353, 1
      %s355 = scalar_select %p352, %s353, %s354
      %p358 = pneg %p352
      %p359 = scmp.eq.s32.totalorder %s27, 1
      %p360 = por %p358, %p359
      %p361 = scmp.ne.s32.totalorder %s353, %s356
      %p362 = scmp.eq.s32.totalorder %s27, 0
      %p363 = por %p361, %p362
      %p364 = scmp.ne.s32.totalorder %s353, %s356
      %p365 = scmp.eq.s32.totalorder %s32, 1
      %p366 = por %p364, %p365
      %p367 = scmp.ne.s32.totalorder %s356, %s357
      %p368 = scmp.eq.s32.totalorder %s32, 0
      %p369 = por %p367, %p368
      %p370 = scmp.ne.s32.totalorder %s356, %s357
      %p371 = scmp.eq.s32.totalorder %s33, 1
      %p372 = por %p370, %p371
      %p374 = scmp.ne.s32.totalorder %s357, %s373
      %p375 = scmp.eq.s32.totalorder %s33, 0
      %p376 = por %p374, %p375
      %s377 = ssub.s32 %s34, %s46
      %s378 = ssub.s32 %s35, %s42
      %s379 = sor.u32 %s377, %s378
      %p380 = scmp.eq.s32.totalorder %s379, 0
      %s382 = sadd.s32 %s381, 1
      %s383 = scalar_select %p380, %s381, %s382
      %p386 = pneg %p380
      %p387 = scmp.eq.s32.totalorder %s27, 1
      %p388 = por %p386, %p387
      %p389 = scmp.ne.s32.totalorder %s381, %s384
      %p390 = scmp.eq.s32.totalorder %s27, 0
      %p391 = por %p389, %p390
      %p392 = scmp.ne.s32.totalorder %s381, %s384
      %p393 = scmp.eq.s32.totalorder %s32, 1
      %p394 = por %p392, %p393
      %p395 = scmp.ne.s32.totalorder %s384, %s385
      %p396 = scmp.eq.s32.totalorder %s32, 0
      %p397 = por %p395, %p396
      %p398 = scmp.ne.s32.totalorder %s384, %s385
      %p399 = scmp.eq.s32.totalorder %s33, 1
      %p400 = por %p398, %p399
      %p402 = scmp.ne.s32.totalorder %s385, %s401
      %p403 = scmp.eq.s32.totalorder %s33, 0
      %p404 = por %p402, %p403
      %p405 = scmp.le.s32.totalorder 1, %s27
      %p406 = scmp.lt.s32.totalorder %s27, 3
      %p407 = pnand %p405, %p406
      %p408 = pneg %p407
      // Predicated region
      $region9: #{tpu_custom_call.1} parent=5 // pred_check
        _
      $region10: #{tpu_custom_call.1} parent=5 // pred_check_branch
        %410 = sbr.rel (%p407) target = $region12
      $region11: #{tpu_custom_call.1} parent=5 // pred_region
        %s411 = ssub.s32 %s27, 1
        // Predicated region
        $region13: #{tpu_custom_call.1} parent=11 // pred_check
          %p412 = pneg %p119
        $region14: #{tpu_custom_call.1} parent=11 // pred_check_branch
          %414 = sbr.rel (%p412) target = $region16
        $region15: #{tpu_custom_call.1} parent=11 // pred_region
          %p415 = scmp.lt.s32.totalorder %s37, 0
          %s416 = scalar_select %p415, %s37, 0
          %s417 = smul.addr %s416, 8
          %s418 = scalar_lea.vmem %s2, %s417
        $region16: #{tpu_custom_call.1} parent=11 // pred_fallthru
          _
        // Predicated region
        $region17: #{tpu_custom_call.1} parent=11 // pred_check
          %p419 = pneg %p145
        $region18: #{tpu_custom_call.1} parent=11 // pred_check_branch
          %421 = sbr.rel (%p419) target = $region20
        $region19: #{tpu_custom_call.1} parent=11 // pred_region
          %p422 = scmp.lt.s32.totalorder %s37, 0
          %s423 = scalar_select %p422, %s37, 0
          %s424 = smul.addr %s423, 8
          %s425 = scalar_lea.vmem %s3, %s424
        $region20: #{tpu_custom_call.1} parent=11 // pred_fallthru
          _
        // Predicated region
        $region21: #{tpu_custom_call.1} parent=11 // pred_check
          %p426 = pneg %p166
        $region22: #{tpu_custom_call.1} parent=11 // pred_check_branch
          %428 = sbr.rel (%p426) target = $region24
        $region23: #{tpu_custom_call.1} parent=11 // pred_region
          _
        $region24: #{tpu_custom_call.1} parent=11 // pred_fallthru
          _
        // Predicated region
        $region25: #{tpu_custom_call.1} parent=11 // pred_check
          %p429 = pneg %p187
        $region26: #{tpu_custom_call.1} parent=11 // pred_check_branch
          %431 = sbr.rel (%p429) target = $region28
        $region27: #{tpu_custom_call.1} parent=11 // pred_region
          _
        $region28: #{tpu_custom_call.1} parent=11 // pred_fallthru
          _
        // Predicated region
        $region29: #{tpu_custom_call.1} parent=11 // pred_check
          %p432 = pneg %p208
        $region30: #{tpu_custom_call.1} parent=11 // pred_check_branch
          %434 = sbr.rel (%p432) target = $region32
        $region31: #{tpu_custom_call.1} parent=11 // pred_region
          _
        $region32: #{tpu_custom_call.1} parent=11 // pred_fallthru
          _
        // Predicated region
        $region33: #{tpu_custom_call.1} parent=11 // pred_check
          %p435 = pneg %p229
        $region34: #{tpu_custom_call.1} parent=11 // pred_check_branch
          %437 = sbr.rel (%p435) target = $region36
        $region35: #{tpu_custom_call.1} parent=11 // pred_region
          _
        $region36: #{tpu_custom_call.1} parent=11 // pred_fallthru
          _
        // Predicated region
        $region37: #{tpu_custom_call.1} parent=11 // pred_check
          %p438 = pneg %p250
        $region38: #{tpu_custom_call.1} parent=11 // pred_check_branch
          %440 = sbr.rel (%p438) target = $region40
        $region39: #{tpu_custom_call.1} parent=11 // pred_region
          _
        $region40: #{tpu_custom_call.1} parent=11 // pred_fallthru
          _
        // Predicated region
        $region41: #{tpu_custom_call.1} parent=11 // pred_check
          %p441 = pneg %p271
        $region42: #{tpu_custom_call.1} parent=11 // pred_check_branch
          %443 = sbr.rel (%p441) target = $region44
        $region43: #{tpu_custom_call.1} parent=11 // pred_region
          _
        $region44: #{tpu_custom_call.1} parent=11 // pred_fallthru
          _
        // Predicated region
        $region45: #{tpu_custom_call.1} parent=11 // pred_check
          %p444 = pneg %p292
        $region46: #{tpu_custom_call.1} parent=11 // pred_check_branch
          %446 = sbr.rel (%p444) target = $region48
        $region47: #{tpu_custom_call.1} parent=11 // pred_region
          _
        $region48: #{tpu_custom_call.1} parent=11 // pred_fallthru
          _
        // Predicated region
        $region49: #{tpu_custom_call.1} parent=11 // pred_check
          %p447 = pneg %p313
        $region50: #{tpu_custom_call.1} parent=11 // pred_check_branch
          %449 = sbr.rel (%p447) target = $region52
        $region51: #{tpu_custom_call.1} parent=11 // pred_region
          _
        $region52: #{tpu_custom_call.1} parent=11 // pred_fallthru
          _
      $region12: #{tpu_custom_call.1} parent=5 // pred_fallthru
        _
      %p450 = scmp.lt.s32.totalorder %s27, 2
      // Predicated region
      $region53: #{tpu_custom_call.1} parent=5 // pred_check
        %p451 = pneg %p450
      $region54: #{tpu_custom_call.1} parent=5 // pred_check_branch
        %453 = sbr.rel (%p451) target = $region56
      $region55: #{tpu_custom_call.1} parent=5 // pred_region
        // Predicated region
        $region57: #{tpu_custom_call.1} parent=55 // pred_check
          %p454 = pneg %p61
        $region58: #{tpu_custom_call.1} parent=55 // pred_check_branch
          %456 = sbr.rel (%p454) target = $region60
        $region59: #{tpu_custom_call.1} parent=55 // pred_region
          %p457 = scmp.lt.s32.totalorder %s34, 1
          %s458 = scalar_select %p457, %s34, 1
          %p459 = scmp.lt.s32.totalorder %s35, 0
          %s460 = scalar_select %p459, %s35, 0
          %s461 = sadd.s32 %s460, %s458
          %s462 = smul.addr %s461, 8
          %s463 = scalar_lea.vmem %s0, %s462
        $region60: #{tpu_custom_call.1} parent=55 // pred_fallthru
          _
        // Predicated region
        $region61: #{tpu_custom_call.1} parent=55 // pred_check
          %p464 = pneg %p87
        $region62: #{tpu_custom_call.1} parent=55 // pred_check_branch
          %466 = sbr.rel (%p464) target = $region64
        $region63: #{tpu_custom_call.1} parent=55 // pred_region
          %p467 = scmp.lt.s32.totalorder %s34, 1
          %s468 = scalar_select %p467, %s34, 1
          %s469 = smul.addr %s468, 4
          %s470 = scalar_lea.vmem %s1, %s469
        $region64: #{tpu_custom_call.1} parent=55 // pred_fallthru
          _
      $region56: #{tpu_custom_call.1} parent=5 // pred_fallthru
        _
      %p471 = scmp.le.s32.totalorder 1, %s27
      %p472 = scmp.lt.s32.totalorder %s27, 3
      %p473 = pnand %p471, %p472
      %p474 = pneg %p473
      // Predicated region
      $region65: #{tpu_custom_call.1} parent=5 // pred_check
        _
      $region66: #{tpu_custom_call.1} parent=5 // pred_check_branch
        %476 = sbr.rel (%p473) target = $region68
      $region67: #{tpu_custom_call.1} parent=5 // pred_region
        %s477 = ssub.s32 %s27, 1
        %p478 = scmp.lt.s32.totalorder %s36, 1
        %s479 = scalar_select %p478, %s36, 1
        %p480 = scmp.lt.s32.totalorder %s37, 0
        %s481 = scalar_select %p480, %s37, 0
        %s482 = sadd.s32 %s481, %s479
        %s483 = smul.addr %s482, 8
        %s484 = scalar_lea.vmem %s0, %s483
        %p485 = pneg %p67
        %p486 = pneg %p64
        %p487 = scmp.lt.s32.totalorder %s36, 1
        %s488 = scalar_select %p487, %s36, 1
        %s489 = smul.addr %s488, 4
        %s490 = scalar_lea.vmem %s1, %s489
        %p491 = pneg %p93
        %p492 = pneg %p90
        %p493 = scmp.lt.s32.totalorder %s37, 0
        %s494 = scalar_select %p493, %s37, 0
        %s495 = smul.addr %s494, 8
        %s496 = scalar_lea.vmem %s2, %s495
        %p497 = pneg %p119
        %p498 = pneg %p116
        %p499 = scmp.lt.s32.totalorder %s37, 0
        %s500 = scalar_select %p499, %s37, 0
        %s501 = smul.addr %s500, 8
        %s502 = scalar_lea.vmem %s3, %s501
        %p503 = pneg %p145
        %p504 = pneg %p142
        %p505 = pneg %p166
        %p506 = pneg %p163
        %p507 = pneg %p187
        %p508 = pneg %p184
        %p509 = pneg %p208
        %p510 = pneg %p205
        %p511 = pneg %p229
        %p512 = pneg %p226
        %p513 = pneg %p250
        %p514 = pneg %p247
        %p515 = pneg %p271
        %p516 = pneg %p268
        %p517 = pneg %p292
        %p518 = pneg %p289
        %p519 = pneg %p313
        %p520 = pneg %p310
        %p521 = pneg %p341
        %p522 = pneg %p338
        %s523 = sand.u32 %s328, 1
        %s524 = scalar_lea.sflag [#allocation3], %s523
        %s525 = sand.u32 %s328, 1
        %s526 = smul.addr %s525, 4
        %s527 = scalar_lea.vmem [#allocation2], %s526
        %p528 = pneg %p369
        %p529 = pneg %p366
        %s530 = sand.u32 %s32, 1
        %s531 = scalar_lea.sflag [#allocation5], %s530
        %s532 = sand.u32 %s356, 1
        %s533 = smul.addr %s532, 4
        %s534 = scalar_lea.vmem [#allocation4], %s533
        %p535 = pneg %p397
        %p536 = pneg %p394
        %s537 = sand.u32 %s32, 1
        %s538 = scalar_lea.sflag [#allocation5], %s537
        %s539 = sand.u32 %s384, 1
        %s540 = smul.addr %s539, 4
        %s541 = scalar_lea.vmem [#allocation6], %s540
        %p542 = scmp.lt.s32.totalorder %s36, 1
        %s543 = scalar_select %p542, %s36, 1
        %p544 = scmp.lt.s32.totalorder %s37, 0
        %s545 = scalar_select %p544, %s37, 0
        %s546 = sadd.s32 %s545, %s543
        %s547 = smul.addr %s546, 8
        %s548 = scalar_lea.vmem %s0, %s547
        %p549 = scmp.lt.s32.totalorder %s36, 1
        %s550 = scalar_select %p549, %s36, 1
        %s551 = smul.addr %s550, 4
        %s552 = scalar_lea.vmem %s1, %s551
        %p553 = scmp.lt.s32.totalorder %s37, 0
        %s554 = scalar_select %p553, %s37, 0
        %s555 = smul.addr %s554, 8
        %s556 = scalar_lea.vmem %s2, %s555
        %p557 = scmp.lt.s32.totalorder %s37, 0
        %s558 = scalar_select %p557, %s37, 0
        %s559 = smul.addr %s558, 8
        %s560 = scalar_lea.vmem %s3, %s559
        %v562 = vld [vmem:[%s548] sm:$0xff]
        %v563 = vld [vmem:[%s552] sm:$0x7]
        %v564 = vmul.f32 %v562, %v562
        %vm565 = vcmask 523264
        %v566 = vsel %vm565, %v564, 0.0
        %567 = vadd.xlane.f32.xlu0 %v566
        %v568 = vpop.xlane.xlu0 %567
        %v569 = vrcp.pop 64.0
        %v570 = vmul.f32 64.0, %v569
        %v571 = vsub.f32 1.0, %v570
        %v572 = vmul.f32 %v569, %v571
        %v573 = vadd.f32 %v569, %v572
        %vm574 = vweird.f32 %v569
        %v575 = vsel %vm574, %v569, %v573
        %v576 = vmul.f32 %v568, %v575
        %v577 = vadd.f32 %v576, 1e-05
        %v578 = vrsqrt.pop %v577
        %v579 = vmul.f32 %v578, %v577
        %v580 = vmul.f32 %v579, %v578
        %v581 = vmul.f32 0.5, %v580
        %v582 = vsub.f32 1.5, %v581
        %v583 = vmul.f32 %v578, %v582
        %vm584 = vweird.f32 %v577
        %vm585 = vweird.f32 %v578
        %vm586 = vmor %vm584, %vm585
        %v587 = vsel %vm586, %v578, %v583
        %v588 = vmul.f32 %v562, %v587
        %v589 = vld [vmem:[%s4] sm:$0x1]
        %v591 = vperm.slane %v589, 0
        %v593 = vmul.f32 %v588, %v591
        %v594 = vadd.f32 %v563, 1.0
        %v595 = vperm.slane %v594, 1
        %v596 = vmul.f32 %v593, %v595
        %v597 = vperm.slane %v563, 0
        %v598 = vadd.f32 %v596, %v597
        %v599 = vpack.c.bf16 %v598, %v598
        %v600 = vld [vmem:[%s5] sm:$0xf]
        %v601 = vld [vmem:[%s5 + $0x4] sm:$0xf]
        %v602 = vld [vmem:[%s5 + $0x8] sm:$0xf]
        %v603 = vld [vmem:[%s5 + $0xc] sm:$0xf]
        %v604 = vld [vmem:[%s5 + $0x10] sm:$0xf]
        %v605 = vld [vmem:[%s5 + $0x14] sm:$0xf]
        %v606 = vld [vmem:[%s5 + $0x18] sm:$0xf]
        %v607 = vld [vmem:[%s5 + $0x1c] sm:$0xf]
        %v616 = vunpack.c.l.b16 %v600
        %v617 = vunpack.c.l.b16 %v601
        %v618 = vunpack.c.l.b16 %v602
        %v619 = vunpack.c.l.b16 %v603
        %v620 = vunpack.c.l.b16 %v604
        %v621 = vunpack.c.l.b16 %v605
        %v622 = vunpack.c.l.b16 %v606
        %v623 = vunpack.c.l.b16 %v607
        %v624 = vpack.c.b16 %v617, %v616
        %v625 = vpack.c.b16 %v619, %v618
        %v626 = vpack.c.b16 %v621, %v620
        %v627 = vpack.c.b16 %v623, %v622
        %v633 = vsel %vm565, %v599, 0
        %635 = vmatpush.bf16.msra.mxu0 0
        %636 = vmatpush.bf16.msra.mxu0 0
        %637 = vmatpush.bf16.msra.mxu0 0
        %638 = vmatpush.bf16.msra.mxu0 0
        %639 = vmatpush.bf16.msra.mxu0 %v627
        %640 = vmatpush.bf16.msra.mxu0 %v626
        %641 = vmatpush.bf16.msra.mxu0 %v625
        %642 = vmatpush.bf16.msra.mxu0 %v624
        %643 = vmatmul.bf16.gmra.mxu0 %v633
        %v644 = vpop.f32.mrf.mxu0
        %v645 = vadd.f32 0.0, %v644
        %v646 = vpop.f32.mrf.mxu0
        %647 = vdwg.mxu0
        %v648 = vld [vmem:[%s6] sm:$0xf]
        %v649 = vld [vmem:[%s6 + $0x4] sm:$0xf]
        %v650 = vld [vmem:[%s6 + $0x8] sm:$0xf]
        %v651 = vld [vmem:[%s6 + $0xc] sm:$0xf]
        %v652 = vld [vmem:[%s6 + $0x10] sm:$0xf]
        %v653 = vld [vmem:[%s6 + $0x14] sm:$0xf]
        %v654 = vld [vmem:[%s6 + $0x18] sm:$0xf]
        %v655 = vld [vmem:[%s6 + $0x1c] sm:$0xf]
        %v664 = vunpack.c.l.b16 %v648
        %v665 = vunpack.c.l.b16 %v649
        %v666 = vunpack.c.l.b16 %v650
        %v667 = vunpack.c.l.b16 %v651
        %v668 = vunpack.c.l.b16 %v652
        %v669 = vunpack.c.l.b16 %v653
        %v670 = vunpack.c.l.b16 %v654
        %v671 = vunpack.c.l.b16 %v655
        %v672 = vpack.c.b16 %v665, %v664
        %v673 = vpack.c.b16 %v667, %v666
        %v674 = vpack.c.b16 %v669, %v668
        %v675 = vpack.c.b16 %v671, %v670
        %680 = vmatpush.bf16.msra.mxu0 0
        %681 = vmatpush.bf16.msra.mxu0 0
        %682 = vmatpush.bf16.msra.mxu0 0
        %683 = vmatpush.bf16.msra.mxu0 0
        %684 = vmatpush.bf16.msra.mxu0 %v675
        %685 = vmatpush.bf16.msra.mxu0 %v674
        %686 = vmatpush.bf16.msra.mxu0 %v673
        %687 = vmatpush.bf16.msra.mxu0 %v672
        %688 = vmatmul.bf16.gmra.mxu0 %v633
        %v689 = vpop.f32.mrf.mxu0
        %v690 = vadd.f32 0.0, %v689
        %v691 = vpop.f32.mrf.mxu0
        %692 = vdwg.mxu0
        %v693 = vld [vmem:[%s7] sm:$0xf]
        %v694 = vld [vmem:[%s7 + $0x4] sm:$0xf]
        %v695 = vld [vmem:[%s7 + $0x8] sm:$0xf]
        %v696 = vld [vmem:[%s7 + $0xc] sm:$0xf]
        %v697 = vld [vmem:[%s7 + $0x10] sm:$0xf]
        %v698 = vld [vmem:[%s7 + $0x14] sm:$0xf]
        %v699 = vld [vmem:[%s7 + $0x18] sm:$0xf]
        %v700 = vld [vmem:[%s7 + $0x1c] sm:$0xf]
        %v709 = vunpack.c.l.b16 %v693
        %v710 = vunpack.c.l.b16 %v694
        %v711 = vunpack.c.l.b16 %v695
        %v712 = vunpack.c.l.b16 %v696
        %v713 = vunpack.c.l.b16 %v697
        %v714 = vunpack.c.l.b16 %v698
        %v715 = vunpack.c.l.b16 %v699
        %v716 = vunpack.c.l.b16 %v700
        %v717 = vpack.c.b16 %v710, %v709
        %v718 = vpack.c.b16 %v712, %v711
        %v719 = vpack.c.b16 %v714, %v713
        %v720 = vpack.c.b16 %v716, %v715
        %725 = vmatpush.bf16.msra.mxu0 0
        %726 = vmatpush.bf16.msra.mxu0 0
        %727 = vmatpush.bf16.msra.mxu0 0
        %728 = vmatpush.bf16.msra.mxu0 0
        %729 = vmatpush.bf16.msra.mxu0 %v720
        %730 = vmatpush.bf16.msra.mxu0 %v719
        %731 = vmatpush.bf16.msra.mxu0 %v718
        %732 = vmatpush.bf16.msra.mxu0 %v717
        %733 = vmatmul.bf16.gmra.mxu0 %v633
        %v734 = vpop.f32.mrf.mxu0
        %v735 = vadd.f32 0.0, %v734
        %v736 = vpop.f32.mrf.mxu0
        %737 = vdwg.mxu0
        %v738 = vld [vmem:[%s8] sm:$0x1]
        %v739 = vld [vmem:[%s9] sm:$0x1]
        %v740 = vsel %vm565, %v645, 0.0
        %741 = vadd.xlane.f32.xlu0 %v740
        %v742 = vpop.xlane.xlu0 %741
        %v743 = vmul.f32 %v742, %v575
        %v744 = vsub.f32 %v645, %v743
        %v745 = vmul.f32 %v744, %v744
        %v746 = vsel %vm565, %v745, 0.0
        %747 = vadd.xlane.f32.xlu0 %v746
        %v748 = vpop.xlane.xlu0 %747
        %v749 = vmul.f32 %v748, %v575
        %v750 = vadd.f32 %v749, 1e-05
        %v751 = vrsqrt.pop %v750
        %v752 = vmul.f32 %v751, %v750
        %v753 = vmul.f32 %v752, %v751
        %v754 = vmul.f32 0.5, %v753
        %v755 = vsub.f32 1.5, %v754
        %v756 = vmul.f32 %v751, %v755
        %vm757 = vweird.f32 %v750
        %vm758 = vweird.f32 %v751
        %vm759 = vmor %vm757, %vm758
        %v760 = vsel %vm759, %v751, %v756
        %v761 = vmul.f32 %v744, %v760
        %v763 = vperm.slane %v738, 0
        %v765 = vmul.f32 %v761, %v763
        %v767 = vperm.slane %v739, 0
        %v769 = vadd.f32 %v765, %v767
        %v770 = vld [vmem:[%s10] sm:$0x1]
        %v771 = vld [vmem:[%s11] sm:$0x1]
        %vm772 = vcmask 261120
        %v773 = vsel %vm772, %v690, 0.0
        %774 = vadd.xlane.f32.xlu0 %v773
        %v775 = vpop.xlane.xlu0 %774
        %v776 = vrcp.pop 32.0
        %v777 = vmul.f32 32.0, %v776
        %v778 = vsub.f32 1.0, %v777
        %v779 = vmul.f32 %v776, %v778
        %v780 = vadd.f32 %v776, %v779
        %vm781 = vweird.f32 %v776
        %v782 = vsel %vm781, %v776, %v780
        %v783 = vmul.f32 %v775, %v782
        %v784 = vsub.f32 %v690, %v783
        %v785 = vmul.f32 %v784, %v784
        %v786 = vsel %vm772, %v785, 0.0
        %787 = vadd.xlane.f32.xlu0 %v786
        %v788 = vpop.xlane.xlu0 %787
        %v789 = vmul.f32 %v788, %v782
        %v790 = vadd.f32 %v789, 1e-05
        %v791 = vrsqrt.pop %v790
        %v792 = vmul.f32 %v791, %v790
        %v793 = vmul.f32 %v792, %v791
        %v794 = vmul.f32 0.5, %v793
        %v795 = vsub.f32 1.5, %v794
        %v796 = vmul.f32 %v791, %v795
        %vm797 = vweird.f32 %v790
        %vm798 = vweird.f32 %v791
        %vm799 = vmor %vm797, %vm798
        %v800 = vsel %vm799, %v791, %v796
        %v801 = vmul.f32 %v784, %v800
        %v803 = vperm.slane %v770, 0
        %v805 = vmul.f32 %v801, %v803
        %v807 = vperm.slane %v771, 0
        %v809 = vadd.f32 %v805, %v807
        %v810 = vld [vmem:[%s556] sm:$0xff]
        %v811 = vld [vmem:[%s560] sm:$0xff]
        %813 = vrot.lane.b32.xlu0 %v810, 16
        %v814 = vpop.permute.xlu0 %813
        %816 = vrot.lane.b32.xlu0 %v810, 32
        %v817 = vpop.permute.xlu0 %816
        %819 = vrot.lane.b32.xlu0 %v810, 48
        %v820 = vpop.permute.xlu0 %819
        %vm822 = vcmask 130048
        %v823 = vsel %vm822, %v810, %v814
        %v824 = vsel %vm772, %v823, %v817
        %vm825 = vcmask 392192
        %v826 = vsel %vm825, %v824, %v820
        %828 = vrot.lane.b32.xlu0 %v811, 16
        %v829 = vpop.permute.xlu0 %828
        %831 = vrot.lane.b32.xlu0 %v811, 32
        %v832 = vpop.permute.xlu0 %831
        %834 = vrot.lane.b32.xlu0 %v811, 48
        %v835 = vpop.permute.xlu0 %834
        %v837 = vsel %vm822, %v811, %v829
        %v838 = vsel %vm772, %v837, %v832
        %v839 = vsel %vm825, %v838, %v835
        %v840 = vlaneseq
        %v841 = vand.u32 %v840, 127
        %vm842 = vcmp.lt.s32.totalorder %v841, 0
        %v843 = vsub.s32 0, %v841
        %v844 = vsel %vm842, %v843, %v841
        %v845 = vshrl.u32 %v844, 1
        %v846 = vand.u32 %v844, 1
        %v847 = vsub.s32 0, %v846
        %v848 = vsel %vm842, %v847, %v846
        %vm849 = vcmp.ne.s32.totalorder %v848, 0
        %vm850 = vcmp.lt.s32.totalorder %v848, 0
        %vm851 = vmand %vm850, %vm849
        %v852 = vadd.s32 %v848, 2
        %v853 = vsel %vm851, %v852, %v848
        %vm854 = vcmp.eq.s32.totalorder %v853, 0
        %vm855 = vcmask 1048064
        %856 = vrot.lane.b32.xlu0 %v769, 64
        %v857 = vpop.permute.xlu0 %856
        %v858 = vsel %vm855, %v857, %v769
        %859 = vrot.lane.b32.xlu0 %v858, 64
        %v860 = vpop.permute.xlu0 %859
        %v861 = vsel %vm855, %v860, %v769
        %863 = vrot.lane.b32.xlu0 %v861, 127
        %v864 = vpop.permute.xlu0 %863
        %866 = vrot.lane.b32.xlu0 %v861, 65
        %v867 = vpop.permute.xlu0 %866
        %v869 = vsel %vm854, %v864, %v867
        %v870 = vmul.f32 %v769, %v826
        %v871 = vmul.f32 %v869, %v839
        %v872 = vadd.f32 %v870, %v871
        %v873 = vpack.c.bf16 %v872, %v872
        %vm874 = vcmask 519168
        %875 = vst.msk [vmem:[%s527] sm:$0xf] %vm874, %v873
        %vm876 = vcmask 1047808
        %877 = vrot.lane.b32.xlu0 %v809, 32
        %v878 = vpop.permute.xlu0 %877
        %v879 = vsel %vm876, %v878, %v809
        %880 = vrot.lane.b32.xlu0 %v879, 32
        %v881 = vpop.permute.xlu0 %880
        %v882 = vsel %vm876, %v881, %v809
        %884 = vrot.lane.b32.xlu0 %v882, 127
        %v885 = vpop.permute.xlu0 %884
        %887 = vrot.lane.b32.xlu0 %v882, 97
        %v888 = vpop.permute.xlu0 %887
        %v890 = vsel %vm854, %v885, %v888
        %v891 = vmul.f32 %v809, %v823
        %v892 = vmul.f32 %v890, %v837
        %v893 = vadd.f32 %v891, %v892
        %v894 = vpack.c.bf16 %v893, %v893
        %vm895 = vcmask 257024
        %896 = vst.msk [vmem:[%s534] sm:$0xf] %vm895, %v894
        %v897 = vpack.c.bf16 %v735, %v735
        %898 = vst.msk [vmem:[%s541] sm:$0xf] %vm895, %v897
        %s899 = sand.u32 %s328, 1
        %s900 = scalar_lea.sflag [#allocation3], %s899
        %s901 = sand.u32 %s328, 1
        %s902 = smul.addr %s901, 4
        %s903 = scalar_lea.vmem [#allocation2], %s902
        %s904 = sand.u32 %s32, 1
        %s905 = scalar_lea.sflag [#allocation5], %s904
        %s906 = sand.u32 %s356, 1
        %s907 = smul.addr %s906, 4
        %s908 = scalar_lea.vmem [#allocation4], %s907
        %s909 = sand.u32 %s32, 1
        %s910 = scalar_lea.sflag [#allocation5], %s909
        %s911 = sand.u32 %s384, 1
        %s912 = smul.addr %s911, 4
        %s913 = scalar_lea.vmem [#allocation6], %s912
        // Predicated region
        $region69: #{tpu_custom_call.1} parent=67 // pred_check
          %p914 = pneg %p338
        $region70: #{tpu_custom_call.1} parent=67 // pred_check_branch
          %916 = sbr.rel (%p914) target = $region72
        $region71: #{tpu_custom_call.1} parent=67 // pred_region
          %918 = vsyncadd %s900, 0
          %s919 = sadd.s32 %s37, %s36
          %s920 = smul.addr %s919, 4
          %s921 = scalar_lea.hbm %s12, %s920
          %s923 = sshll.u32 %s903, 4
          %s924 = int_to_ptr.vmem [resolvable:$true] %s923
          %s925 = sshll.u32 %s921, 4
          %s926 = int_to_ptr.hbm [resolvable:$true] %s925
          %928 = dma.vmem_to_hbm [thread:$0]  %s924, 64, %s926, %s900
        $region72: #{tpu_custom_call.1} parent=67 // pred_fallthru
          _
        // Predicated region
        $region73: #{tpu_custom_call.1} parent=67 // pred_check
          %p929 = pneg %p366
        $region74: #{tpu_custom_call.1} parent=67 // pred_check_branch
          %931 = sbr.rel (%p929) target = $region76
        $region75: #{tpu_custom_call.1} parent=67 // pred_region
          %933 = vsyncadd %s905, 0
          %s934 = sadd.s32 %s37, %s36
          %s935 = smul.addr %s934, 4
          %s936 = scalar_lea.hbm %s13, %s935
          %s938 = sshll.u32 %s908, 4
          %s939 = int_to_ptr.vmem [resolvable:$true] %s938
          %s940 = sshll.u32 %s936, 4
          %s941 = int_to_ptr.hbm [resolvable:$true] %s940
          %943 = dma.vmem_to_hbm [thread:$0]  %s939, 64, %s941, %s905
        $region76: #{tpu_custom_call.1} parent=67 // pred_fallthru
          _
        // Predicated region
        $region77: #{tpu_custom_call.1} parent=67 // pred_check
          %p944 = pneg %p394
        $region78: #{tpu_custom_call.1} parent=67 // pred_check_branch
          %946 = sbr.rel (%p944) target = $region80
        $region79: #{tpu_custom_call.1} parent=67 // pred_region
          %948 = vsyncadd %s910, 0
          %s949 = sadd.s32 %s37, %s36
          %s950 = smul.addr %s949, 4
          %s951 = scalar_lea.hbm %s14, %s950
          %s953 = sshll.u32 %s913, 4
          %s954 = int_to_ptr.vmem [resolvable:$true] %s953
          %s955 = sshll.u32 %s951, 4
          %s956 = int_to_ptr.hbm [resolvable:$true] %s955
          %958 = dma.vmem_to_hbm [thread:$0]  %s954, 64, %s956, %s910
        $region80: #{tpu_custom_call.1} parent=67 // pred_fallthru
          _
      $region68: #{tpu_custom_call.1} parent=5 // pred_fallthru
        _
      %p959 = scmp.le.s32.totalorder 2, %s27
      // Predicated region
      $region81: #{tpu_custom_call.1} parent=5 // pred_check
        %p960 = pneg %p959
      $region82: #{tpu_custom_call.1} parent=5 // pred_check_branch
        %962 = sbr.rel (%p960) target = $region84
      $region83: #{tpu_custom_call.1} parent=5 // pred_region
        %s963 = ssub.s32 %s27, 2
        // Predicated region
        $region85: #{tpu_custom_call.1} parent=83 // pred_check
          %p964 = pneg %p344
        $region86: #{tpu_custom_call.1} parent=83 // pred_check_branch
          %966 = sbr.rel (%p964) target = $region88
        $region87: #{tpu_custom_call.1} parent=83 // pred_region
          %s967 = sand.u32 %s329, 1
          %s968 = scalar_lea.sflag [#allocation3], %s967
          %s969 = sand.u32 %s329, 1
          %s970 = smul.addr %s969, 4
          %s971 = scalar_lea.vmem [#allocation2], %s970
          %973 = dma.done %s968, 64
        $region88: #{tpu_custom_call.1} parent=83 // pred_fallthru
          _
        // Predicated region
        $region89: #{tpu_custom_call.1} parent=83 // pred_check
          %p974 = pneg %p372
        $region90: #{tpu_custom_call.1} parent=83 // pred_check_branch
          %976 = sbr.rel (%p974) target = $region92
        $region91: #{tpu_custom_call.1} parent=83 // pred_region
          %s977 = sand.u32 %s33, 1
          %s978 = scalar_lea.sflag [#allocation5], %s977
          %s979 = sand.u32 %s357, 1
          %s980 = smul.addr %s979, 4
          %s981 = scalar_lea.vmem [#allocation4], %s980
          %983 = dma.done %s978, 64
        $region92: #{tpu_custom_call.1} parent=83 // pred_fallthru
          _
        // Predicated region
        $region93: #{tpu_custom_call.1} parent=83 // pred_check
          %p984 = pneg %p400
        $region94: #{tpu_custom_call.1} parent=83 // pred_check_branch
          %986 = sbr.rel (%p984) target = $region96
        $region95: #{tpu_custom_call.1} parent=83 // pred_region
          %s987 = sand.u32 %s33, 1
          %s988 = scalar_lea.sflag [#allocation5], %s987
          %s989 = sand.u32 %s385, 1
          %s990 = smul.addr %s989, 4
          %s991 = scalar_lea.vmem [#allocation6], %s990
          %993 = dma.done %s988, 64
        $region96: #{tpu_custom_call.1} parent=83 // pred_fallthru
          _
      $region84: #{tpu_custom_call.1} parent=5 // pred_fallthru
        _
    $region6: #{tpu_custom_call.1} parent=1 // loop_footer
      %s31 = sadd.s32 1, %s27
    $region7: #{tpu_custom_call.1} parent=1 // loop_footer_branch
      %26 = sbr.rel target = $region3
    $region8: #{tpu_custom_call.1} parent=1 // loop_exit
      _
    %994 = vsyncpa [#allocation3], 1
    %s995 = scalar_lea.sflag [#allocation3], 1
    %996 = vsyncpa %s995, 1
    %997 = vsyncpa [#allocation5], 1
    %s998 = scalar_lea.sflag [#allocation5], 1
    %999 = vsyncpa %s998, 1

</llo_original>
